<compile_context>
chip_gen: v7x
topology: tpu7x:2x2x1
jax: 0.10.0
libtpu: 0.0.40
codegen_flags: <defaults>
</compile_context>

<pallas_src>
import functools

import jax
import jax.numpy as jnp
from jax.experimental import pallas as pl
from jax.experimental.pallas import tpu as pltpu

# logical dims (from the PyTorch module)
IN_DIM = 116     # fc1 in / fc3 out
HID = 500        # hidden width
LAT = 25         # latent (mu / sigma)
DEC = 495        # fc2 out
LAB = HID - DEC  # = 5, one-hot label width implied by the cat

# lane-padded dims used by the kernel
IN_P = 128
HID_P = 512
LAT_P = 128
MS_P = 2 * LAT_P   # fused mu|logsigma head width
LAB_P = 16         # label / bottom-slice rows (bf16-tile friendly)


def _round_up(n, m):
    return ((n + m - 1) // m) * m


def _pad2(a, rows, cols):
    """Zero-pad a 2-D array to (rows, cols) in float32."""
    out = jnp.zeros((rows, cols), jnp.float32)
    return out.at[: a.shape[0], : a.shape[1]].set(a.astype(jnp.float32))


def cvae_kernel(x_ref, lab_ref, eps_ref,
                w1_ref, b1_ref, wh_ref, bh_ref, whb_ref,
                wms_ref, bms_ref, w2_ref, b2_ref, w3_ref, b3_ref,
                out_ref, mu_ref, logsig_ref):
    f32 = jnp.float32
    bf16 = jnp.bfloat16

    def bdot(act_f32, w_ref):
        # bf16 x bf16 MXU matmul with f32 accumulation; weights are already
        # stored bf16, only the activation LHS is cast (cheap, per-use).
        return jnp.dot(act_f32.astype(bf16), w_ref[...],
                       preferred_element_type=f32)

    relu = lambda v: jnp.maximum(v, 0.0)

    x = x_ref[...]
    lab = lab_ref[...]
    eps = eps_ref[...]

    # ---- encoder (hidden applied twice, second time without ReLU — per spec) ----
    h = relu(bdot(x, w1_ref) + b1_ref[...])
    h = relu(bdot(h, wh_ref) + bh_ref[...])
    h = bdot(h, wh_ref) + bh_ref[...]

    # fused mu|logsigma head: one (512, 256) dot, lane-aligned slices
    ms = bdot(h, wms_ref) + bms_ref[...]
    mu = ms[:, :LAT_P]
    logsig = ms[:, LAT_P:]

    # ---- reparameterization: z = exp(0.5*logsigma) * eps + mu (f32) ----
    z = jnp.exp(0.5 * logsig) * eps + mu

    # ---- decoder ----
    # w2/b2 are zero-padded so hd has exact zeros in cols >= 495; therefore
    # hd @ wh == cat(hd_495, 0) @ wh, and the label contribution is added via
    # the tiny bottom slice whb = wh[495:500, :].
    hd = relu(bdot(z, w2_ref) + b2_ref[...])
    hh = relu(bdot(hd, wh_ref) + bdot(lab, whb_ref) + bh_ref[...])
    logits = bdot(hh, w3_ref) + b3_ref[...]

    # sigmoid via EUP exp + EUP approx reciprocal (keeps the VALU slot clear)
    out_ref[...] = pl.reciprocal(1.0 + jnp.exp(-logits), approx=True)
    mu_ref[...] = mu
    logsig_ref[...] = logsig


def prepare_params(params, *, weights_dtype=jnp.bfloat16):
    """One-time host-side padding / bf16 conversion of the weights."""
    (w1, b1, wh, bh, wmu, bmu, wsig, bsig, w2, b2, w3, b3) = params
    wd = weights_dtype
    w1_p = _pad2(w1, IN_P, HID_P).astype(wd)
    wh_p = _pad2(wh, HID_P, HID_P).astype(wd)
    whb_p = _pad2(wh[DEC:, :], LAB_P, HID_P).astype(wd)   # rows 495..499 of hidden
    wms_p = jnp.concatenate(
        [_pad2(wmu, HID_P, LAT_P), _pad2(wsig, HID_P, LAT_P)], axis=1).astype(wd)
    w2_p = _pad2(w2, LAT_P, HID_P).astype(wd)              # (25,495) -> (128,512)
    w3_p = _pad2(w3, HID_P, IN_P).astype(wd)

    b1_p = _pad2(b1, 1, HID_P)
    bh_p = _pad2(bh, 1, HID_P)
    bms_p = jnp.concatenate([_pad2(bmu, 1, LAT_P), _pad2(bsig, 1, LAT_P)], axis=1)
    b2_p = _pad2(b2, 1, HID_P)
    b3_p = _pad2(b3, 1, IN_P)

    return (w1_p, b1_p, wh_p, bh_p, whb_p, wms_p, bms_p, w2_p, b2_p, w3_p, b3_p)


def _choose_tile(B, max_tile_b):
    # ~half the batch per tile so the grid has >=2 steps when B allows
    # (lets dimension_semantics=("parallel",) shard across v7x's 2 TCs);
    # rows are always a multiple of 8, and a multiple of 128 when large.
    target = _round_up(max(-(-B // 2), 8), 8)
    if target >= 128:
        target = _round_up(target, 128)
    return min(max_tile_b, target)


def cvae_forward(x, label, eps, prepared, *, max_tile_b=512):
    """x: (B,116), label: (B,5), eps: (B,25). Returns (output, mu, logsigma)."""
    B = x.shape[0]
    (w1_p, b1_p, wh_p, bh_p, whb_p, wms_p, bms_p, w2_p, b2_p, w3_p, b3_p) = prepared

    tile_b = _choose_tile(B, max_tile_b)
    b_pad = _round_up(B, tile_b)
    grid = (b_pad // tile_b,)

    # activation padding (layout plumbing, not compute)
    x_p = _pad2(x, b_pad, IN_P)
    lab_p = _pad2(label, b_pad, LAB_P)
    eps_p = _pad2(eps, b_pad, LAT_P)

    # activations / outputs: blocked over batch
    def act_spec(lanes):
        return pl.BlockSpec((tile_b, lanes), lambda i: (i, 0))

    # weights / biases: full block, constant index map -> DMA'd once, resident.
    # TODO(synk): pipeline_mode=pl.Buffered(1) would drop the redundant second
    # weight buffer (~1.2 MB bf16); skipped since VMEM headroom is already large.
    def wspec(a):
        return pl.BlockSpec(a.shape, lambda i: (0, 0))

    out_shapes = (
        jax.ShapeDtypeStruct((b_pad, IN_P), jnp.float32),   # reconstruction
        jax.ShapeDtypeStruct((b_pad, LAT_P), jnp.float32),  # mu
        jax.ShapeDtypeStruct((b_pad, LAT_P), jnp.float32),  # logsigma
    )

    out_p, mu_p, ls_p = pl.pallas_call(
        cvae_kernel,
        grid=grid,
        in_specs=[act_spec(IN_P), act_spec(LAB_P), act_spec(LAT_P),
                  wspec(w1_p), wspec(b1_p), wspec(wh_p), wspec(bh_p), wspec(whb_p),
                  wspec(wms_p), wspec(bms_p), wspec(w2_p), wspec(b2_p),
                  wspec(w3_p), wspec(b3_p)],
        out_specs=(act_spec(IN_P), act_spec(LAT_P), act_spec(LAT_P)),
        out_shape=out_shapes,
        compiler_params=pltpu.CompilerParams(
            dimension_semantics=("parallel",),        # shards batch grid on v7x's 2 TCs
            vmem_limit_bytes=32 * 1024 * 1024,        # safe on v7x's 64 MiB/TC budget
        ),
    )(x_p, lab_p, eps_p,
      w1_p, b1_p, wh_p, bh_p, whb_p,
      wms_p, bms_p, w2_p, b2_p, w3_p, b3_p)

    return out_p[:B, :IN_DIM], mu_p[:B, :LAT], ls_p[:B, :LAT]


def init_params(key):
    """Deterministic synthetic parameters. Linear weights stored as (in, out)."""
    def lin(k, fan_in, fan_out):
        kw, kb = jax.random.split(k)
        w = jax.random.normal(kw, (fan_in, fan_out), jnp.float32) * 0.05
        b = jax.random.normal(kb, (1, fan_out), jnp.float32) * 0.05
        return w, b

    keys = jax.random.split(key, 6)
    w1, b1 = lin(keys[0], IN_DIM, HID)     # fc1
    wh, bh = lin(keys[1], HID, HID)        # hidden
    wmu, bmu = lin(keys[2], HID, LAT)      # mu
    wsig, bsig = lin(keys[3], HID, LAT)    # sigma
    w2, b2 = lin(keys[4], LAT, DEC)        # fc2
    w3, b3 = lin(keys[5], HID, IN_DIM)     # fc3
    return (w1, b1, wh, bh, wmu, bmu, wsig, bsig, w2, b2, w3, b3)


def cvae_reference(x, label, eps, params, *, weights_dtype=jnp.bfloat16):
    """Plain-JAX reference of the exact PyTorch forward semantics.

    Dots are done with bf16 operands + f32 accumulation (same MXU op as the
    kernel) so the comparison isolates kernel correctness from the deliberate
    bf16-matmul choice; sigmoid is exact (tolerance covers the approx recip).
    """
    (w1, b1, wh, bh, wmu, bmu, wsig, bsig, w2, b2, w3, b3) = params
    wd = weights_dtype
    f32 = jnp.float32

    def bdot(a, w):
        return jnp.dot(a.astype(wd), w.astype(wd), preferred_element_type=f32)

    relu = lambda v: jnp.maximum(v, 0.0)
    h = relu(bdot(x, w1) + b1)
    h = relu(bdot(h, wh) + bh)
    h = bdot(h, wh) + bh
    mu = bdot(h, wmu) + bmu
    logsig = bdot(h, wsig) + bsig
    z = jnp.exp(0.5 * logsig) * eps + mu
    hd = relu(bdot(z, w2) + b2)
    hcat = jnp.concatenate([hd, label], axis=1)
    hh = relu(bdot(hcat, wh) + bh)
    out = jax.nn.sigmoid(bdot(hh, w3) + b3)
    return out, mu, logsig


if __name__ == "__main__":
    key = jax.random.PRNGKey(0)
    k_params, k_x, k_lab, k_eps = jax.random.split(key, 4)

    B = 8
    params = init_params(k_params)
    prepared = prepare_params(params)   # one-time padding / bf16 conversion

    x = jax.random.normal(k_x, (B, IN_DIM), jnp.float32)
    # one-hot labels of width 5 (implied by cat -> 500 going into `hidden`)
    lab_idx = jax.random.randint(k_lab, (B,), 0, LAB)
    label = jax.nn.one_hot(lab_idx, LAB, dtype=jnp.float32)
    # TODO(synk): the module draws eps = torch.randn(...) inside forward; we
    # take eps as an explicit input for determinism/testability instead of
    # sampling in-kernel with pltpu.prng_random_bits.
    eps = jax.random.normal(k_eps, (B, LAT), jnp.float32)

    out, mu, logsig = cvae_forward(x, label, eps, prepared)
    jax.block_until_ready((out, mu, logsig))

    ref_out, ref_mu, ref_ls = cvae_reference(x, label, eps, params)
    assert out.shape == (B, IN_DIM) and mu.shape == (B, LAT) and logsig.shape == (B, LAT)
    # mu / logsigma: same bf16xbf16->f32 MXU math; only accumulation-order diffs
    assert jnp.allclose(mu, ref_mu, atol=2e-3, rtol=2e-3)
    assert jnp.allclose(logsig, ref_ls, atol=2e-3, rtol=2e-3)
    # output: approx-reciprocal sigmoid -> slightly looser tolerance
    assert jnp.allclose(out, ref_out, atol=5e-3, rtol=5e-3)

    print("KERNEL_OK")
</pallas_src>

<mosaic_0001>
module attributes {stable_mosaic.version = 11 : i64} {
  func.func @cvae_kernel(%arg0: i32, %arg1: memref<8x128xf32, #tpu.memory_space<vmem>>, %arg2: memref<8x16xf32, #tpu.memory_space<vmem>>, %arg3: memref<8x128xf32, #tpu.memory_space<vmem>>, %arg4: memref<128x512xbf16, #tpu.memory_space<vmem>>, %arg5: memref<1x512xf32, #tpu.memory_space<vmem>>, %arg6: memref<512x512xbf16, #tpu.memory_space<vmem>>, %arg7: memref<1x512xf32, #tpu.memory_space<vmem>>, %arg8: memref<16x512xbf16, #tpu.memory_space<vmem>>, %arg9: memref<512x256xbf16, #tpu.memory_space<vmem>>, %arg10: memref<1x256xf32, #tpu.memory_space<vmem>>, %arg11: memref<128x512xbf16, #tpu.memory_space<vmem>>, %arg12: memref<1x512xf32, #tpu.memory_space<vmem>>, %arg13: memref<512x128xbf16, #tpu.memory_space<vmem>>, %arg14: memref<1x128xf32, #tpu.memory_space<vmem>>, %arg15: memref<8x128xf32, #tpu.memory_space<vmem>>, %arg16: memref<8x128xf32, #tpu.memory_space<vmem>>, %arg17: memref<8x128xf32, #tpu.memory_space<vmem>>) attributes {dimension_semantics = [#tpu.dimension_semantics<parallel>], iteration_bounds = array<i64: 1>, scalar_prefetch = 0 : i64, scratch_operands = 0 : i64, tpu.core_type = #tpu.core_type<tc>, window_params = [{transform_indices = @transform_0, window_bounds = array<i64: 8, 128>}, {transform_indices = @transform_1, window_bounds = array<i64: 8, 16>}, {transform_indices = @transform_2, window_bounds = array<i64: 8, 128>}, {pipeline_mode = #tpu.pipeline_mode<synchronous>, transform_indices = @transform_3, window_bounds = array<i64: 128, 512>}, {pipeline_mode = #tpu.pipeline_mode<synchronous>, transform_indices = @transform_4, window_bounds = array<i64: 1, 512>}, {pipeline_mode = #tpu.pipeline_mode<synchronous>, transform_indices = @transform_5, window_bounds = array<i64: 512, 512>}, {pipeline_mode = #tpu.pipeline_mode<synchronous>, transform_indices = @transform_6, window_bounds = array<i64: 1, 512>}, {pipeline_mode = #tpu.pipeline_mode<synchronous>, transform_indices = @transform_7, window_bounds = array<i64: 16, 512>}, {pipeline_mode = #tpu.pipeline_mode<synchronous>, transform_indices = @transform_8, window_bounds = array<i64: 512, 256>}, {pipeline_mode = #tpu.pipeline_mode<synchronous>, transform_indices = @transform_9, window_bounds = array<i64: 1, 256>}, {pipeline_mode = #tpu.pipeline_mode<synchronous>, transform_indices = @transform_10, window_bounds = array<i64: 128, 512>}, {pipeline_mode = #tpu.pipeline_mode<synchronous>, transform_indices = @transform_11, window_bounds = array<i64: 1, 512>}, {pipeline_mode = #tpu.pipeline_mode<synchronous>, transform_indices = @transform_12, window_bounds = array<i64: 512, 128>}, {pipeline_mode = #tpu.pipeline_mode<synchronous>, transform_indices = @transform_13, window_bounds = array<i64: 1, 128>}, {transform_indices = @transform_14, window_bounds = array<i64: 8, 128>}, {transform_indices = @transform_15, window_bounds = array<i64: 8, 128>}, {transform_indices = @transform_16, window_bounds = array<i64: 8, 128>}]} {
    %c0 = arith.constant 0 : index
    %c0_0 = arith.constant 0 : index
    %0 = vector.load %arg1[%c0, %c0_0] : memref<8x128xf32, #tpu.memory_space<vmem>>, vector<8x128xf32>
    %c0_1 = arith.constant 0 : index
    %c0_2 = arith.constant 0 : index
    %1 = vector.load %arg2[%c0_1, %c0_2] : memref<8x16xf32, #tpu.memory_space<vmem>>, vector<8x16xf32>
    %c0_3 = arith.constant 0 : index
    %c0_4 = arith.constant 0 : index
    %2 = vector.load %arg3[%c0_3, %c0_4] : memref<8x128xf32, #tpu.memory_space<vmem>>, vector<8x128xf32>
    %3 = arith.truncf %0 : vector<8x128xf32> to vector<8x128xbf16>
    %c0_5 = arith.constant 0 : index
    %c0_6 = arith.constant 0 : index
    %4 = vector.load %arg4[%c0_5, %c0_6] : memref<128x512xbf16, #tpu.memory_space<vmem>>, vector<128x512xbf16>
    %cst = arith.constant dense<0.000000e+00> : vector<8x512xf32>
    %5 = tpu.matmul %3, %4, %cst {dimension_numbers = #tpu.dot_dimension_numbers<[1], [0], [0], [1], [0, 0, 1, 1], [], []>} : vector<8x128xbf16>, vector<128x512xbf16>, vector<8x512xf32> -> vector<8x512xf32>
    %c0_7 = arith.constant 0 : index
    %c0_8 = arith.constant 0 : index
    %6 = vector.load %arg5[%c0_7, %c0_8] : memref<1x512xf32, #tpu.memory_space<vmem>>, vector<1x512xf32>
    %7 = vector.broadcast %6 : vector<1x512xf32> to vector<8x512xf32>
    %8 = arith.addf %5, %7 : vector<8x512xf32>
    %cst_9 = arith.constant 0.000000e+00 : f32
    %9 = vector.broadcast %cst_9 : f32 to vector<8x512xf32>
    %10 = arith.maximumf %8, %9 : vector<8x512xf32>
    %11 = arith.truncf %10 : vector<8x512xf32> to vector<8x512xbf16>
    %c0_10 = arith.constant 0 : index
    %c0_11 = arith.constant 0 : index
    %12 = vector.load %arg6[%c0_10, %c0_11] : memref<512x512xbf16, #tpu.memory_space<vmem>>, vector<512x512xbf16>
    %cst_12 = arith.constant dense<0.000000e+00> : vector<8x512xf32>
    %13 = tpu.matmul %11, %12, %cst_12 {dimension_numbers = #tpu.dot_dimension_numbers<[1], [0], [0], [1], [0, 0, 1, 1], [], []>} : vector<8x512xbf16>, vector<512x512xbf16>, vector<8x512xf32> -> vector<8x512xf32>
    %c0_13 = arith.constant 0 : index
    %c0_14 = arith.constant 0 : index
    %14 = vector.load %arg7[%c0_13, %c0_14] : memref<1x512xf32, #tpu.memory_space<vmem>>, vector<1x512xf32>
    %15 = vector.broadcast %14 : vector<1x512xf32> to vector<8x512xf32>
    %16 = arith.addf %13, %15 : vector<8x512xf32>
    %cst_15 = arith.constant 0.000000e+00 : f32
    %17 = vector.broadcast %cst_15 : f32 to vector<8x512xf32>
    %18 = arith.maximumf %16, %17 : vector<8x512xf32>
    %19 = arith.truncf %18 : vector<8x512xf32> to vector<8x512xbf16>
    %c0_16 = arith.constant 0 : index
    %c0_17 = arith.constant 0 : index
    %20 = vector.load %arg6[%c0_16, %c0_17] : memref<512x512xbf16, #tpu.memory_space<vmem>>, vector<512x512xbf16>
    %cst_18 = arith.constant dense<0.000000e+00> : vector<8x512xf32>
    %21 = tpu.matmul %19, %20, %cst_18 {dimension_numbers = #tpu.dot_dimension_numbers<[1], [0], [0], [1], [0, 0, 1, 1], [], []>} : vector<8x512xbf16>, vector<512x512xbf16>, vector<8x512xf32> -> vector<8x512xf32>
    %c0_19 = arith.constant 0 : index
    %c0_20 = arith.constant 0 : index
    %22 = vector.load %arg7[%c0_19, %c0_20] : memref<1x512xf32, #tpu.memory_space<vmem>>, vector<1x512xf32>
    %23 = vector.broadcast %22 : vector<1x512xf32> to vector<8x512xf32>
    %24 = arith.addf %21, %23 : vector<8x512xf32>
    %25 = arith.truncf %24 : vector<8x512xf32> to vector<8x512xbf16>
    %c0_21 = arith.constant 0 : index
    %c0_22 = arith.constant 0 : index
    %26 = vector.load %arg9[%c0_21, %c0_22] : memref<512x256xbf16, #tpu.memory_space<vmem>>, vector<512x256xbf16>
    %cst_23 = arith.constant dense<0.000000e+00> : vector<8x256xf32>
    %27 = tpu.matmul %25, %26, %cst_23 {dimension_numbers = #tpu.dot_dimension_numbers<[1], [0], [0], [1], [0, 0, 1, 1], [], []>} : vector<8x512xbf16>, vector<512x256xbf16>, vector<8x256xf32> -> vector<8x256xf32>
    %c0_24 = arith.constant 0 : index
    %c0_25 = arith.constant 0 : index
    %28 = vector.load %arg10[%c0_24, %c0_25] : memref<1x256xf32, #tpu.memory_space<vmem>>, vector<1x256xf32>
    %29 = vector.broadcast %28 : vector<1x256xf32> to vector<8x256xf32>
    %30 = arith.addf %27, %29 : vector<8x256xf32>
    %31 = vector.extract_strided_slice %30 {offsets = [0, 0], sizes = [8, 128], strides = [1, 1]} : vector<8x256xf32> to vector<8x128xf32>
    %32 = vector.extract_strided_slice %30 {offsets = [0, 128], sizes = [8, 128], strides = [1, 1]} : vector<8x256xf32> to vector<8x128xf32>
    %cst_26 = arith.constant 5.000000e-01 : f32
    %33 = vector.broadcast %cst_26 : f32 to vector<8x128xf32>
    %34 = arith.mulf %33, %32 : vector<8x128xf32>
    %35 = math.exp %34 : vector<8x128xf32>
    %36 = arith.mulf %35, %2 : vector<8x128xf32>
    %37 = arith.addf %36, %31 : vector<8x128xf32>
    %38 = arith.truncf %37 : vector<8x128xf32> to vector<8x128xbf16>
    %c0_27 = arith.constant 0 : index
    %c0_28 = arith.constant 0 : index
    %39 = vector.load %arg11[%c0_27, %c0_28] : memref<128x512xbf16, #tpu.memory_space<vmem>>, vector<128x512xbf16>
    %cst_29 = arith.constant dense<0.000000e+00> : vector<8x512xf32>
    %40 = tpu.matmul %38, %39, %cst_29 {dimension_numbers = #tpu.dot_dimension_numbers<[1], [0], [0], [1], [0, 0, 1, 1], [], []>} : vector<8x128xbf16>, vector<128x512xbf16>, vector<8x512xf32> -> vector<8x512xf32>
    %c0_30 = arith.constant 0 : index
    %c0_31 = arith.constant 0 : index
    %41 = vector.load %arg12[%c0_30, %c0_31] : memref<1x512xf32, #tpu.memory_space<vmem>>, vector<1x512xf32>
    %42 = vector.broadcast %41 : vector<1x512xf32> to vector<8x512xf32>
    %43 = arith.addf %40, %42 : vector<8x512xf32>
    %cst_32 = arith.constant 0.000000e+00 : f32
    %44 = vector.broadcast %cst_32 : f32 to vector<8x512xf32>
    %45 = arith.maximumf %43, %44 : vector<8x512xf32>
    %46 = arith.truncf %45 : vector<8x512xf32> to vector<8x512xbf16>
    %c0_33 = arith.constant 0 : index
    %c0_34 = arith.constant 0 : index
    %47 = vector.load %arg6[%c0_33, %c0_34] : memref<512x512xbf16, #tpu.memory_space<vmem>>, vector<512x512xbf16>
    %cst_35 = arith.constant dense<0.000000e+00> : vector<8x512xf32>
    %48 = tpu.matmul %46, %47, %cst_35 {dimension_numbers = #tpu.dot_dimension_numbers<[1], [0], [0], [1], [0, 0, 1, 1], [], []>} : vector<8x512xbf16>, vector<512x512xbf16>, vector<8x512xf32> -> vector<8x512xf32>
    %49 = arith.truncf %1 : vector<8x16xf32> to vector<8x16xbf16>
    %c0_36 = arith.constant 0 : index
    %c0_37 = arith.constant 0 : index
    %50 = vector.load %arg8[%c0_36, %c0_37] : memref<16x512xbf16, #tpu.memory_space<vmem>>, vector<16x512xbf16>
    %cst_38 = arith.constant dense<0.000000e+00> : vector<8x512xf32>
    %51 = tpu.matmul %49, %50, %cst_38 {dimension_numbers = #tpu.dot_dimension_numbers<[1], [0], [0], [1], [0, 0, 1, 1], [], []>} : vector<8x16xbf16>, vector<16x512xbf16>, vector<8x512xf32> -> vector<8x512xf32>
    %52 = arith.addf %48, %51 : vector<8x512xf32>
    %c0_39 = arith.constant 0 : index
    %c0_40 = arith.constant 0 : index
    %53 = vector.load %arg7[%c0_39, %c0_40] : memref<1x512xf32, #tpu.memory_space<vmem>>, vector<1x512xf32>
    %54 = vector.broadcast %53 : vector<1x512xf32> to vector<8x512xf32>
    %55 = arith.addf %52, %54 : vector<8x512xf32>
    %cst_41 = arith.constant 0.000000e+00 : f32
    %56 = vector.broadcast %cst_41 : f32 to vector<8x512xf32>
    %57 = arith.maximumf %55, %56 : vector<8x512xf32>
    %58 = arith.truncf %57 : vector<8x512xf32> to vector<8x512xbf16>
    %c0_42 = arith.constant 0 : index
    %c0_43 = arith.constant 0 : index
    %59 = vector.load %arg13[%c0_42, %c0_43] : memref<512x128xbf16, #tpu.memory_space<vmem>>, vector<512x128xbf16>
    %cst_44 = arith.constant dense<0.000000e+00> : vector<8x128xf32>
    %60 = tpu.matmul %58, %59, %cst_44 {dimension_numbers = #tpu.dot_dimension_numbers<[1], [0], [0], [1], [0, 0, 1, 1], [], []>} : vector<8x512xbf16>, vector<512x128xbf16>, vector<8x128xf32> -> vector<8x128xf32>
    %c0_45 = arith.constant 0 : index
    %c0_46 = arith.constant 0 : index
    %61 = vector.load %arg14[%c0_45, %c0_46] : memref<1x128xf32, #tpu.memory_space<vmem>>, vector<1x128xf32>
    %62 = vector.broadcast %61 : vector<1x128xf32> to vector<8x128xf32>
    %63 = arith.addf %60, %62 : vector<8x128xf32>
    %cst_47 = arith.constant 0.000000e+00 : f32
    %64 = vector.broadcast %cst_47 : f32 to vector<8x128xf32>
    %65 = arith.subf %64, %63 : vector<8x128xf32>
    %66 = math.exp %65 : vector<8x128xf32>
    %cst_48 = arith.constant 1.000000e+00 : f32
    %67 = vector.broadcast %cst_48 : f32 to vector<8x128xf32>
    %68 = arith.addf %67, %66 : vector<8x128xf32>
    %69 = tpu.reciprocal %68 {approx = true} : vector<8x128xf32> -> vector<8x128xf32>
    %c0_49 = arith.constant 0 : index
    %c0_50 = arith.constant 0 : index
    %70 = vector.load %arg15[%c0_49, %c0_50] : memref<8x128xf32, #tpu.memory_space<vmem>>, vector<8x128xf32>
    tpu.vector_store %arg15[%c0_49, %c0_50], %69 {strides = array<i32>} : memref<8x128xf32, #tpu.memory_space<vmem>>, vector<8x128xf32>,
    %c0_51 = arith.constant 0 : index
    %c0_52 = arith.constant 0 : index
    %71 = vector.load %arg16[%c0_51, %c0_52] : memref<8x128xf32, #tpu.memory_space<vmem>>, vector<8x128xf32>
    tpu.vector_store %arg16[%c0_51, %c0_52], %31 {strides = array<i32>} : memref<8x128xf32, #tpu.memory_space<vmem>>, vector<8x128xf32>,
    %c0_53 = arith.constant 0 : index
    %c0_54 = arith.constant 0 : index
    %72 = vector.load %arg17[%c0_53, %c0_54] : memref<8x128xf32, #tpu.memory_space<vmem>>, vector<8x128xf32>
    tpu.vector_store %arg17[%c0_53, %c0_54], %32 {strides = array<i32>} : memref<8x128xf32, #tpu.memory_space<vmem>>, vector<8x128xf32>,
    return
  }
  func.func @transform_0(%arg0: i32) -> (i32, i32) {
    %c0_i32 = arith.constant 0 : i32
    %c0_i32_0 = arith.constant 0 : i32
    return %arg0, %c0_i32 : i32, i32
  }
  func.func @transform_1(%arg0: i32) -> (i32, i32) {
    %c0_i32 = arith.constant 0 : i32
    %c0_i32_0 = arith.constant 0 : i32
    return %arg0, %c0_i32 : i32, i32
  }
  func.func @transform_2(%arg0: i32) -> (i32, i32) {
    %c0_i32 = arith.constant 0 : i32
    %c0_i32_0 = arith.constant 0 : i32
    return %arg0, %c0_i32 : i32, i32
  }
  func.func @transform_3(%arg0: i32) -> (i32, i32) {
    %c0_i32 = arith.constant 0 : i32
    %c0_i32_0 = arith.constant 0 : i32
    %c0_i32_1 = arith.constant 0 : i32
    return %c0_i32, %c0_i32_0 : i32, i32
  }
  func.func @transform_4(%arg0: i32) -> (i32, i32) {
    %c0_i32 = arith.constant 0 : i32
    %c0_i32_0 = arith.constant 0 : i32
    %c0_i32_1 = arith.constant 0 : i32
    return %c0_i32, %c0_i32_0 : i32, i32
  }
  func.func @transform_5(%arg0: i32) -> (i32, i32) {
    %c0_i32 = arith.constant 0 : i32
    %c0_i32_0 = arith.constant 0 : i32
    %c0_i32_1 = arith.constant 0 : i32
    return %c0_i32, %c0_i32_0 : i32, i32
  }
  func.func @transform_6(%arg0: i32) -> (i32, i32) {
    %c0_i32 = arith.constant 0 : i32
    %c0_i32_0 = arith.constant 0 : i32
    %c0_i32_1 = arith.constant 0 : i32
    return %c0_i32, %c0_i32_0 : i32, i32
  }
  func.func @transform_7(%arg0: i32) -> (i32, i32) {
    %c0_i32 = arith.constant 0 : i32
    %c0_i32_0 = arith.constant 0 : i32
    %c0_i32_1 = arith.constant 0 : i32
    return %c0_i32, %c0_i32_0 : i32, i32
  }
  func.func @transform_8(%arg0: i32) -> (i32, i32) {
    %c0_i32 = arith.constant 0 : i32
    %c0_i32_0 = arith.constant 0 : i32
    %c0_i32_1 = arith.constant 0 : i32
    return %c0_i32, %c0_i32_0 : i32, i32
  }
  func.func @transform_9(%arg0: i32) -> (i32, i32) {
    %c0_i32 = arith.constant 0 : i32
    %c0_i32_0 = arith.constant 0 : i32
    %c0_i32_1 = arith.constant 0 : i32
    return %c0_i32, %c0_i32_0 : i32, i32
  }
  func.func @transform_10(%arg0: i32) -> (i32, i32) {
    %c0_i32 = arith.constant 0 : i32
    %c0_i32_0 = arith.constant 0 : i32
    %c0_i32_1 = arith.constant 0 : i32
    return %c0_i32, %c0_i32_0 : i32, i32
  }
  func.func @transform_11(%arg0: i32) -> (i32, i32) {
    %c0_i32 = arith.constant 0 : i32
    %c0_i32_0 = arith.constant 0 : i32
    %c0_i32_1 = arith.constant 0 : i32
    return %c0_i32, %c0_i32_0 : i32, i32
  }
  func.func @transform_12(%arg0: i32) -> (i32, i32) {
    %c0_i32 = arith.constant 0 : i32
    %c0_i32_0 = arith.constant 0 : i32
    %c0_i32_1 = arith.constant 0 : i32
    return %c0_i32, %c0_i32_0 : i32, i32
  }
  func.func @transform_13(%arg0: i32) -> (i32, i32) {
    %c0_i32 = arith.constant 0 : i32
    %c0_i32_0 = arith.constant 0 : i32
    %c0_i32_1 = arith.constant 0 : i32
    return %c0_i32, %c0_i32_0 : i32, i32
  }
  func.func @transform_14(%arg0: i32) -> (i32, i32) {
    %c0_i32 = arith.constant 0 : i32
    %c0_i32_0 = arith.constant 0 : i32
    return %arg0, %c0_i32 : i32, i32
  }
  func.func @transform_15(%arg0: i32) -> (i32, i32) {
    %c0_i32 = arith.constant 0 : i32
    %c0_i32_0 = arith.constant 0 : i32
    return %arg0, %c0_i32 : i32, i32
  }
  func.func @transform_16(%arg0: i32) -> (i32, i32) {
    %c0_i32 = arith.constant 0 : i32
    %c0_i32_0 = arith.constant 0 : i32
    return %arg0, %c0_i32 : i32, i32
  }
}

</mosaic_0001>

<llo_original>
// kernel: tpu_custom_call.1
$region0: #{tpu_custom_call.1}
  #allocation0 [shape = 'u32[]', space=smem, size = 0x4, offset = 0x4, fixed_abs, tag = 'smem constant byte address 0x4 - core index']
  #allocation1 [shape = 'u32[144,128]{1,0:T(1,128)}', space=vmem, size = 0x12000, scoped, tag = 'internal scratch']
  %s0 = inlined_call_operand.hbm [shape: f32[8,128], index: 0, kind: input, shape index: {}]
  %s1 = inlined_call_operand.hbm [shape: f32[8,16], index: 1, kind: input, shape index: {}]
  %s2 = inlined_call_operand.hbm [shape: f32[8,128], index: 2, kind: input, shape index: {}]
  %s3 = inlined_call_operand.hbm [shape: bf16[128,512], index: 3, kind: input, shape index: {}]
  %s4 = inlined_call_operand.vmem [shape: f32[1,512], index: 4, kind: input, shape index: {}]
  %s5 = inlined_call_operand.hbm [shape: bf16[512,512], index: 5, kind: input, shape index: {}]
  %s6 = inlined_call_operand.vmem [shape: f32[1,512], index: 6, kind: input, shape index: {}]
  %s7 = inlined_call_operand.hbm [shape: bf16[16,512], index: 7, kind: input, shape index: {}]
  %s8 = inlined_call_operand.hbm [shape: bf16[512,256], index: 8, kind: input, shape index: {}]
  %s9 = inlined_call_operand.vmem [shape: f32[1,256], index: 9, kind: input, shape index: {}]
  %s10 = inlined_call_operand.hbm [shape: bf16[128,512], index: 10, kind: input, shape index: {}]
  %s11 = inlined_call_operand.vmem [shape: f32[1,512], index: 11, kind: input, shape index: {}]
  %s12 = inlined_call_operand.hbm [shape: bf16[512,128], index: 12, kind: input, shape index: {}]
  %s13 = inlined_call_operand.vmem [shape: f32[1,128], index: 13, kind: input, shape index: {}]
  %s14 = inlined_call_operand.hbm [shape: f32[8,128], index: 14, kind: output, shape index: {0}]
  %s15 = inlined_call_operand.hbm [shape: f32[8,128], index: 15, kind: output, shape index: {1}]
  %s16 = inlined_call_operand.hbm [shape: f32[8,128], index: 16, kind: output, shape index: {2}]
  %17 = xla_tuple %s14, %s15, %s16
  %s18 = sld [smem:[#allocation0]]
  $region118: #{tpu_custom_call.1} parent=0
    _
  %s20 = ssub.s32 1, %s18
  %s21 = scalar_select 0, %s20, %s18
  $region1: #{tpu_custom_call.1} parent=0
    #allocation2 [shape = 'u8[4096]{0}', space=vmem, size = 0x1000, scoped, tag = 'input window, operand 0, single buffered']
    #allocation3 [shape = 's32[1]{0}', space=sflag, size = 0x4, scoped, tag = 'scoped memory for tpu_custom_call.1']
    #allocation4 [shape = 's32[1]{0}', space=sflag, size = 0x4, scoped, tag = 'scoped memory for tpu_custom_call.1']
    #allocation5 [shape = 'u8[4096]{0}', space=vmem, size = 0x1000, scoped, tag = 'input window, operand 1, single buffered']
    #allocation6 [shape = 's32[1]{0}', space=sflag, size = 0x4, scoped, tag = 'scoped memory for tpu_custom_call.1']
    #allocation7 [shape = 'u8[4096]{0}', space=vmem, size = 0x1000, scoped, tag = 'input window, operand 2, single buffered']
    #allocation8 [shape = 'u8[131072]{0}', space=vmem, size = 0x20000, scoped, tag = 'input window, operand 3, single buffered']
    #allocation9 [shape = 's32[1]{0}', space=sflag, size = 0x4, scoped, tag = 'scoped memory for tpu_custom_call.1']
    #allocation10 [shape = 'u8[524288]{0}', space=vmem, size = 0x80000, scoped, tag = 'input window, operand 5, single buffered']
    #allocation11 [shape = 'u8[16384]{0}', space=vmem, size = 0x4000, scoped, tag = 'input window, operand 7, single buffered']
    #allocation12 [shape = 's32[1]{0}', space=sflag, size = 0x4, scoped, tag = 'scoped memory for tpu_custom_call.1']
    #allocation13 [shape = 'u8[262144]{0}', space=vmem, size = 0x40000, scoped, tag = 'input window, operand 8, single buffered']
    #allocation14 [shape = 'u8[131072]{0}', space=vmem, size = 0x20000, scoped, tag = 'input window, operand 10, single buffered']
    #allocation15 [shape = 's32[1]{0}', space=sflag, size = 0x4, scoped, tag = 'scoped memory for tpu_custom_call.1']
    #allocation16 [shape = 'u8[131072]{0}', space=vmem, size = 0x20000, scoped, tag = 'input window, operand 12, single buffered']
    #allocation17 [shape = 'u8[4096]{0}', space=vmem, size = 0x1000, scoped, tag = 'output window, operand 0, single buffered']
    #allocation18 [shape = 'u8[4096]{0}', space=vmem, size = 0x1000, scoped, tag = 'output window, operand 1, single buffered']
    #allocation19 [shape = 's32[1]{0}', space=sflag, size = 0x4, scoped, tag = 'scoped memory for tpu_custom_call.1']
    #allocation20 [shape = 'u8[4096]{0}', space=vmem, size = 0x1000, scoped, tag = 'output window, operand 2, single buffered']
    %22 = vsyncpa [#allocation3], 0
    %23 = vsyncpa [#allocation6], 0
    %24 = vsyncpa [#allocation9], 0
    %25 = vsyncpa [#allocation12], 0
    %26 = vsyncpa [#allocation15], 0
    %27 = vsyncpa [#allocation4], 0
    %28 = vsyncpa [#allocation19], 0
    // Predicated region
    $region2: #{tpu_custom_call.1} parent=1 // pred_check
      _
    $region3: #{tpu_custom_call.1} parent=1 // pred_check_branch
      %30 = sbr.rel (0) target = $region5
    $region4: #{tpu_custom_call.1} parent=1 // pred_region
      %s32 = ssub.s32 128, 128
      %33 = vsyncadd [#allocation3], %s32
      %s35 = sshll.u32 [#allocation2], 4
      %s36 = int_to_ptr.vmem [resolvable:$true] %s35
      %38 = dma.hbm_to_vmem [thread:$0]  %s0, 128, %s36, [#allocation3]
    $region5: #{tpu_custom_call.1} parent=1 // pred_fallthru
      _
    // Predicated region
    $region6: #{tpu_custom_call.1} parent=1 // pred_check
      _
    $region7: #{tpu_custom_call.1} parent=1 // pred_check_branch
      %40 = sbr.rel (0) target = $region9
    $region8: #{tpu_custom_call.1} parent=1 // pred_region
      %s42 = ssub.s32 128, 128
      %43 = vsyncadd [#allocation6], %s42
      %s45 = sshll.u32 [#allocation5], 4
      %s46 = int_to_ptr.vmem [resolvable:$true] %s45
      %48 = dma.hbm_to_vmem [thread:$0]  %s1, 128, %s46, [#allocation6]
    $region9: #{tpu_custom_call.1} parent=1 // pred_fallthru
      _
    // Predicated region
    $region10: #{tpu_custom_call.1} parent=1 // pred_check
      _
    $region11: #{tpu_custom_call.1} parent=1 // pred_check_branch
      %50 = sbr.rel (0) target = $region13
    $region12: #{tpu_custom_call.1} parent=1 // pred_region
      %s52 = ssub.s32 128, 128
      %53 = vsyncadd [#allocation6], %s52
      %s55 = sshll.u32 [#allocation7], 4
      %s56 = int_to_ptr.vmem [resolvable:$true] %s55
      %58 = dma.hbm_to_vmem [thread:$0]  %s2, 128, %s56, [#allocation6]
    $region13: #{tpu_custom_call.1} parent=1 // pred_fallthru
      _
    // Predicated region
    $region14: #{tpu_custom_call.1} parent=1 // pred_check
      _
    $region15: #{tpu_custom_call.1} parent=1 // pred_check_branch
      %60 = sbr.rel (0) target = $region17
    $region16: #{tpu_custom_call.1} parent=1 // pred_region
      %s62 = ssub.s32 4096, 4096
      %63 = vsyncadd [#allocation9], %s62
      %s64 = sshll.u32 [#allocation8], 4
      %s65 = int_to_ptr.vmem [resolvable:$true] %s64
      %70 = dma.hbm_to_vmem [thread:$0]  %s3, 4096, %s65, [#allocation9], 256, 256, 16
    $region17: #{tpu_custom_call.1} parent=1 // pred_fallthru
      _
    // Predicated region
    $region18: #{tpu_custom_call.1} parent=1 // pred_check
      _
    $region19: #{tpu_custom_call.1} parent=1 // pred_check_branch
      %72 = sbr.rel (0) target = $region21
    $region20: #{tpu_custom_call.1} parent=1 // pred_region
      _
    $region21: #{tpu_custom_call.1} parent=1 // pred_fallthru
      _
    // Predicated region
    $region22: #{tpu_custom_call.1} parent=1 // pred_check
      _
    $region23: #{tpu_custom_call.1} parent=1 // pred_check_branch
      %74 = sbr.rel (0) target = $region25
    $region24: #{tpu_custom_call.1} parent=1 // pred_region
      %s76 = ssub.s32 16384, 16384
      %77 = vsyncadd [#allocation9], %s76
      %s78 = sshll.u32 [#allocation10], 4
      %s79 = int_to_ptr.vmem [resolvable:$true] %s78
      %84 = dma.hbm_to_vmem [thread:$0]  %s5, 16384, %s79, [#allocation9], 256, 256, 16
    $region25: #{tpu_custom_call.1} parent=1 // pred_fallthru
      _
    // Predicated region
    $region26: #{tpu_custom_call.1} parent=1 // pred_check
      _
    $region27: #{tpu_custom_call.1} parent=1 // pred_check_branch
      %86 = sbr.rel (0) target = $region29
    $region28: #{tpu_custom_call.1} parent=1 // pred_region
      _
    $region29: #{tpu_custom_call.1} parent=1 // pred_fallthru
      _
    // Predicated region
    $region30: #{tpu_custom_call.1} parent=1 // pred_check
      _
    $region31: #{tpu_custom_call.1} parent=1 // pred_check_branch
      %88 = sbr.rel (0) target = $region33
    $region32: #{tpu_custom_call.1} parent=1 // pred_region
      %s90 = ssub.s32 512, 512
      %91 = vsyncadd [#allocation12], %s90
      %s92 = sshll.u32 [#allocation11], 4
      %s93 = int_to_ptr.vmem [resolvable:$true] %s92
      %98 = dma.hbm_to_vmem [thread:$0]  %s7, 512, %s93, [#allocation12], 256, 256, 16
    $region33: #{tpu_custom_call.1} parent=1 // pred_fallthru
      _
    // Predicated region
    $region34: #{tpu_custom_call.1} parent=1 // pred_check
      _
    $region35: #{tpu_custom_call.1} parent=1 // pred_check_branch
      %100 = sbr.rel (0) target = $region37
    $region36: #{tpu_custom_call.1} parent=1 // pred_region
      %s102 = ssub.s32 8192, 8192
      %103 = vsyncadd [#allocation12], %s102
      %s104 = sshll.u32 [#allocation13], 4
      %s105 = int_to_ptr.vmem [resolvable:$true] %s104
      %110 = dma.hbm_to_vmem [thread:$0]  %s8, 8192, %s105, [#allocation12], 128, 128, 8
    $region37: #{tpu_custom_call.1} parent=1 // pred_fallthru
      _
    // Predicated region
    $region38: #{tpu_custom_call.1} parent=1 // pred_check
      _
    $region39: #{tpu_custom_call.1} parent=1 // pred_check_branch
      %112 = sbr.rel (0) target = $region41
    $region40: #{tpu_custom_call.1} parent=1 // pred_region
      _
    $region41: #{tpu_custom_call.1} parent=1 // pred_fallthru
      _
    // Predicated region
    $region42: #{tpu_custom_call.1} parent=1 // pred_check
      _
    $region43: #{tpu_custom_call.1} parent=1 // pred_check_branch
      %114 = sbr.rel (0) target = $region45
    $region44: #{tpu_custom_call.1} parent=1 // pred_region
      %s116 = ssub.s32 4096, 4096
      %117 = vsyncadd [#allocation15], %s116
      %s118 = sshll.u32 [#allocation14], 4
      %s119 = int_to_ptr.vmem [resolvable:$true] %s118
      %124 = dma.hbm_to_vmem [thread:$0]  %s10, 4096, %s119, [#allocation15], 256, 256, 16
    $region45: #{tpu_custom_call.1} parent=1 // pred_fallthru
      _
    // Predicated region
    $region46: #{tpu_custom_call.1} parent=1 // pred_check
      _
    $region47: #{tpu_custom_call.1} parent=1 // pred_check_branch
      %126 = sbr.rel (0) target = $region49
    $region48: #{tpu_custom_call.1} parent=1 // pred_region
      _
    $region49: #{tpu_custom_call.1} parent=1 // pred_fallthru
      _
    // Predicated region
    $region50: #{tpu_custom_call.1} parent=1 // pred_check
      _
    $region51: #{tpu_custom_call.1} parent=1 // pred_check_branch
      %128 = sbr.rel (0) target = $region53
    $region52: #{tpu_custom_call.1} parent=1 // pred_region
      %s130 = ssub.s32 4096, 4096
      %131 = vsyncadd [#allocation15], %s130
      %s132 = sshll.u32 [#allocation16], 4
      %s133 = int_to_ptr.vmem [resolvable:$true] %s132
      %138 = dma.hbm_to_vmem [thread:$0]  %s12, 4096, %s133, [#allocation15], 64, 64, 4
    $region53: #{tpu_custom_call.1} parent=1 // pred_fallthru
      _
    // Predicated region
    $region54: #{tpu_custom_call.1} parent=1 // pred_check
      _
    $region55: #{tpu_custom_call.1} parent=1 // pred_check_branch
      %140 = sbr.rel (0) target = $region57
    $region56: #{tpu_custom_call.1} parent=1 // pred_region
      _
    $region57: #{tpu_custom_call.1} parent=1 // pred_fallthru
      _
    // Predicated region
    $region58: #{tpu_custom_call.1} parent=1 // pred_check
      _
    $region59: #{tpu_custom_call.1} parent=1 // pred_check_branch
      %142 = sbr.rel (0) target = $region61
    $region60: #{tpu_custom_call.1} parent=1 // pred_region
      %143 = dma.done [#allocation3], 128
    $region61: #{tpu_custom_call.1} parent=1 // pred_fallthru
      _
    // Predicated region
    $region62: #{tpu_custom_call.1} parent=1 // pred_check
      _
    $region63: #{tpu_custom_call.1} parent=1 // pred_check_branch
      %145 = sbr.rel (0) target = $region65
    $region64: #{tpu_custom_call.1} parent=1 // pred_region
      %146 = dma.done [#allocation6], 128
    $region65: #{tpu_custom_call.1} parent=1 // pred_fallthru
      _
    // Predicated region
    $region66: #{tpu_custom_call.1} parent=1 // pred_check
      _
    $region67: #{tpu_custom_call.1} parent=1 // pred_check_branch
      %148 = sbr.rel (0) target = $region69
    $region68: #{tpu_custom_call.1} parent=1 // pred_region
      %149 = dma.done [#allocation6], 128
    $region69: #{tpu_custom_call.1} parent=1 // pred_fallthru
      _
    // Predicated region
    $region70: #{tpu_custom_call.1} parent=1 // pred_check
      _
    $region71: #{tpu_custom_call.1} parent=1 // pred_check_branch
      %151 = sbr.rel (0) target = $region73
    $region72: #{tpu_custom_call.1} parent=1 // pred_region
      %152 = dma.done [#allocation9], 4096
    $region73: #{tpu_custom_call.1} parent=1 // pred_fallthru
      _
    // Predicated region
    $region74: #{tpu_custom_call.1} parent=1 // pred_check
      _
    $region75: #{tpu_custom_call.1} parent=1 // pred_check_branch
      %154 = sbr.rel (0) target = $region77
    $region76: #{tpu_custom_call.1} parent=1 // pred_region
      %155 = dma.done [#allocation9], 16384
    $region77: #{tpu_custom_call.1} parent=1 // pred_fallthru
      _
    // Predicated region
    $region78: #{tpu_custom_call.1} parent=1 // pred_check
      _
    $region79: #{tpu_custom_call.1} parent=1 // pred_check_branch
      %157 = sbr.rel (0) target = $region81
    $region80: #{tpu_custom_call.1} parent=1 // pred_region
      %158 = dma.done [#allocation12], 512
    $region81: #{tpu_custom_call.1} parent=1 // pred_fallthru
      _
    // Predicated region
    $region82: #{tpu_custom_call.1} parent=1 // pred_check
      _
    $region83: #{tpu_custom_call.1} parent=1 // pred_check_branch
      %160 = sbr.rel (0) target = $region85
    $region84: #{tpu_custom_call.1} parent=1 // pred_region
      %161 = dma.done [#allocation12], 8192
    $region85: #{tpu_custom_call.1} parent=1 // pred_fallthru
      _
    // Predicated region
    $region86: #{tpu_custom_call.1} parent=1 // pred_check
      _
    $region87: #{tpu_custom_call.1} parent=1 // pred_check_branch
      %163 = sbr.rel (0) target = $region89
    $region88: #{tpu_custom_call.1} parent=1 // pred_region
      %164 = dma.done [#allocation15], 4096
    $region89: #{tpu_custom_call.1} parent=1 // pred_fallthru
      _
    // Predicated region
    $region90: #{tpu_custom_call.1} parent=1 // pred_check
      _
    $region91: #{tpu_custom_call.1} parent=1 // pred_check_branch
      %166 = sbr.rel (0) target = $region93
    $region92: #{tpu_custom_call.1} parent=1 // pred_region
      %167 = dma.done [#allocation15], 4096
    $region93: #{tpu_custom_call.1} parent=1 // pred_fallthru
      _
    %v169 = vld [vmem:[#allocation2] sm:$0xff]
    %v170 = vld [vmem:[#allocation5] sm:$0xff]
    %v171 = vld [vmem:[#allocation7] sm:$0xff]
    %v172 = vpack.c.bf16 %v169, %v169
    %v173 = vld [vmem:[#allocation8] sm:$0xff]
    %v174 = vld [vmem:[#allocation8 + $0x8] sm:$0xff]
    %v175 = vld [vmem:[#allocation8 + $0x10] sm:$0xff]
    %v176 = vld [vmem:[#allocation8 + $0x18] sm:$0xff]
    %v177 = vld [vmem:[#allocation8 + $0x20] sm:$0xff]
    %v178 = vld [vmem:[#allocation8 + $0x28] sm:$0xff]
    %v179 = vld [vmem:[#allocation8 + $0x30] sm:$0xff]
    %v180 = vld [vmem:[#allocation8 + $0x38] sm:$0xff]
    %v181 = vld [vmem:[#allocation8 + $0x40] sm:$0xff]
    %v182 = vld [vmem:[#allocation8 + $0x48] sm:$0xff]
    %v183 = vld [vmem:[#allocation8 + $0x50] sm:$0xff]
    %v184 = vld [vmem:[#allocation8 + $0x58] sm:$0xff]
    %v185 = vld [vmem:[#allocation8 + $0x60] sm:$0xff]
    %v186 = vld [vmem:[#allocation8 + $0x68] sm:$0xff]
    %v187 = vld [vmem:[#allocation8 + $0x70] sm:$0xff]
    %v188 = vld [vmem:[#allocation8 + $0x78] sm:$0xff]
    %v189 = vld [vmem:[#allocation8 + $0x80] sm:$0xff]
    %v190 = vld [vmem:[#allocation8 + $0x88] sm:$0xff]
    %v191 = vld [vmem:[#allocation8 + $0x90] sm:$0xff]
    %v192 = vld [vmem:[#allocation8 + $0x98] sm:$0xff]
    %v193 = vld [vmem:[#allocation8 + $0xa0] sm:$0xff]
    %v194 = vld [vmem:[#allocation8 + $0xa8] sm:$0xff]
    %v195 = vld [vmem:[#allocation8 + $0xb0] sm:$0xff]
    %v196 = vld [vmem:[#allocation8 + $0xb8] sm:$0xff]
    %v197 = vld [vmem:[#allocation8 + $0xc0] sm:$0xff]
    %v198 = vld [vmem:[#allocation8 + $0xc8] sm:$0xff]
    %v199 = vld [vmem:[#allocation8 + $0xd0] sm:$0xff]
    %v200 = vld [vmem:[#allocation8 + $0xd8] sm:$0xff]
    %v201 = vld [vmem:[#allocation8 + $0xe0] sm:$0xff]
    %v202 = vld [vmem:[#allocation8 + $0xe8] sm:$0xff]
    %v203 = vld [vmem:[#allocation8 + $0xf0] sm:$0xff]
    %v204 = vld [vmem:[#allocation8 + $0xf8] sm:$0xff]
    %v205 = vld [vmem:[%s4] sm:$0xf]
    %v207 = vlaneseq
    %v208 = vshrl.u32 %v207, 7
    %v209 = vsub.s32 0, %v208
    %v210 = vrot.slane %v205, %v209
    %v211 = vlaneseq
    %v212 = vshrl.u32 %v211, 7
    %v213 = vsub.s32 1, %v212
    %v214 = vrot.slane %v205, %v213
    %v215 = vlaneseq
    %v216 = vshrl.u32 %v215, 7
    %v217 = vsub.s32 2, %v216
    %v218 = vrot.slane %v205, %v217
    %v219 = vlaneseq
    %v220 = vshrl.u32 %v219, 7
    %v221 = vsub.s32 3, %v220
    %v222 = vrot.slane %v205, %v221
    %v259 = vunpack.c.l.b16 %v173
    %v260 = vunpack.c.h.b16 %v173
    %v261 = vunpack.c.l.b16 %v174
    %v262 = vunpack.c.h.b16 %v174
    %v263 = vunpack.c.l.b16 %v175
    %v264 = vunpack.c.h.b16 %v175
    %v265 = vunpack.c.l.b16 %v176
    %v266 = vunpack.c.h.b16 %v176
    %v267 = vunpack.c.l.b16 %v177
    %v268 = vunpack.c.h.b16 %v177
    %v269 = vunpack.c.l.b16 %v178
    %v270 = vunpack.c.h.b16 %v178
    %v271 = vunpack.c.l.b16 %v179
    %v272 = vunpack.c.h.b16 %v179
    %v273 = vunpack.c.l.b16 %v180
    %v274 = vunpack.c.h.b16 %v180
    %v275 = vunpack.c.l.b16 %v181
    %v276 = vunpack.c.h.b16 %v181
    %v277 = vunpack.c.l.b16 %v182
    %v278 = vunpack.c.h.b16 %v182
    %v279 = vunpack.c.l.b16 %v183
    %v280 = vunpack.c.h.b16 %v183
    %v281 = vunpack.c.l.b16 %v184
    %v282 = vunpack.c.h.b16 %v184
    %v283 = vunpack.c.l.b16 %v185
    %v284 = vunpack.c.h.b16 %v185
    %v285 = vunpack.c.l.b16 %v186
    %v286 = vunpack.c.h.b16 %v186
    %v287 = vunpack.c.l.b16 %v187
    %v288 = vunpack.c.h.b16 %v187
    %v289 = vunpack.c.l.b16 %v188
    %v290 = vunpack.c.h.b16 %v188
    %v291 = vunpack.c.l.b16 %v189
    %v292 = vunpack.c.h.b16 %v189
    %v293 = vunpack.c.l.b16 %v190
    %v294 = vunpack.c.h.b16 %v190
    %v295 = vunpack.c.l.b16 %v191
    %v296 = vunpack.c.h.b16 %v191
    %v297 = vunpack.c.l.b16 %v192
    %v298 = vunpack.c.h.b16 %v192
    %v299 = vunpack.c.l.b16 %v193
    %v300 = vunpack.c.h.b16 %v193
    %v301 = vunpack.c.l.b16 %v194
    %v302 = vunpack.c.h.b16 %v194
    %v303 = vunpack.c.l.b16 %v195
    %v304 = vunpack.c.h.b16 %v195
    %v305 = vunpack.c.l.b16 %v196
    %v306 = vunpack.c.h.b16 %v196
    %v307 = vunpack.c.l.b16 %v197
    %v308 = vunpack.c.h.b16 %v197
    %v309 = vunpack.c.l.b16 %v198
    %v310 = vunpack.c.h.b16 %v198
    %v311 = vunpack.c.l.b16 %v199
    %v312 = vunpack.c.h.b16 %v199
    %v313 = vunpack.c.l.b16 %v200
    %v314 = vunpack.c.h.b16 %v200
    %v315 = vunpack.c.l.b16 %v201
    %v316 = vunpack.c.h.b16 %v201
    %v317 = vunpack.c.l.b16 %v202
    %v318 = vunpack.c.h.b16 %v202
    %v319 = vunpack.c.l.b16 %v203
    %v320 = vunpack.c.h.b16 %v203
    %v321 = vunpack.c.l.b16 %v204
    %v322 = vunpack.c.h.b16 %v204
    %v323 = vpack.c.b16 %v263, %v259
    %v324 = vpack.c.b16 %v264, %v260
    %v325 = vpack.c.b16 %v265, %v261
    %v326 = vpack.c.b16 %v266, %v262
    %v327 = vpack.c.b16 %v271, %v267
    %v328 = vpack.c.b16 %v272, %v268
    %v329 = vpack.c.b16 %v273, %v269
    %v330 = vpack.c.b16 %v274, %v270
    %v331 = vpack.c.b16 %v279, %v275
    %v332 = vpack.c.b16 %v280, %v276
    %v333 = vpack.c.b16 %v281, %v277
    %v334 = vpack.c.b16 %v282, %v278
    %v335 = vpack.c.b16 %v287, %v283
    %v336 = vpack.c.b16 %v288, %v284
    %v337 = vpack.c.b16 %v289, %v285
    %v338 = vpack.c.b16 %v290, %v286
    %v339 = vpack.c.b16 %v295, %v291
    %v340 = vpack.c.b16 %v296, %v292
    %v341 = vpack.c.b16 %v297, %v293
    %v342 = vpack.c.b16 %v298, %v294
    %v343 = vpack.c.b16 %v303, %v299
    %v344 = vpack.c.b16 %v304, %v300
    %v345 = vpack.c.b16 %v305, %v301
    %v346 = vpack.c.b16 %v306, %v302
    %v347 = vpack.c.b16 %v311, %v307
    %v348 = vpack.c.b16 %v312, %v308
    %v349 = vpack.c.b16 %v313, %v309
    %v350 = vpack.c.b16 %v314, %v310
    %v351 = vpack.c.b16 %v319, %v315
    %v352 = vpack.c.b16 %v320, %v316
    %v353 = vpack.c.b16 %v321, %v317
    %v354 = vpack.c.b16 %v322, %v318
    %387 = vmatprep.subr.bf16.mxu0 %v324
    %388 = vmatpush1.bf16.msra.mxu0 %v323
    %389 = vmatprep.subr.bf16.mxu0 %v328
    %390 = vmatpush1.bf16.msra.mxu0 %v327
    %391 = vmatprep.subr.bf16.mxu0 %v332
    %392 = vmatpush1.bf16.msra.mxu0 %v331
    %393 = vmatprep.subr.bf16.mxu0 %v336
    %394 = vmatpush1.bf16.msra.mxu0 %v335
    %395 = vmatprep.subr.bf16.mxu0 %v340
    %396 = vmatpush1.bf16.msra.mxu0 %v339
    %397 = vmatprep.subr.bf16.mxu0 %v344
    %398 = vmatpush1.bf16.msra.mxu0 %v343
    %399 = vmatprep.subr.bf16.mxu0 %v348
    %400 = vmatpush1.bf16.msra.mxu0 %v347
    %401 = vmatprep.subr.bf16.mxu0 %v352
    %402 = vmatpush1.bf16.msra.mxu0 %v351
    %403 = vmatprep.subr.bf16.mxu0 0
    %404 = vmatpush1.bf16.msra.mxu0 0
    %405 = vmatprep.subr.bf16.mxu0 0
    %406 = vmatpush1.bf16.msra.mxu0 0
    %407 = vmatprep.subr.bf16.mxu0 0
    %408 = vmatpush1.bf16.msra.mxu0 0
    %409 = vmatprep.subr.bf16.mxu0 0
    %410 = vmatpush1.bf16.msra.mxu0 0
    %411 = vmatprep.subr.bf16.mxu0 0
    %412 = vmatpush1.bf16.msra.mxu0 0
    %413 = vmatprep.subr.bf16.mxu0 0
    %414 = vmatpush1.bf16.msra.mxu0 0
    %415 = vmatprep.subr.bf16.mxu0 0
    %416 = vmatpush1.bf16.msra.mxu0 0
    %417 = vmatprep.subr.bf16.mxu0 0
    %418 = vmatpush1.bf16.msra.mxu0 0
    %419 = vmatprep.mubr.bf16.mxu0 0
    %420 = vmatmul.mubr.bf16.gmra.mrb[0].mxu0 %v172
    %v421 = vpop.f32.mrb[0].mxu0
    %v422 = vadd.f32 %v210, %v421
    %v423 = vpop.f32.mrb[0].mxu0
    %v424 = vadd.f32 %v214, %v423
    %v425 = vpop.f32.mrb[0].mxu0
    %v426 = vpop.f32.mrb[0].mxu0
    %427 = vdwg.mxu0
    %428 = vmatprep.subr.bf16.mxu0 %v326
    %429 = vmatpush1.bf16.msra.mxu0 %v325
    %430 = vmatprep.subr.bf16.mxu0 %v330
    %431 = vmatpush1.bf16.msra.mxu0 %v329
    %432 = vmatprep.subr.bf16.mxu0 %v334
    %433 = vmatpush1.bf16.msra.mxu0 %v333
    %434 = vmatprep.subr.bf16.mxu0 %v338
    %435 = vmatpush1.bf16.msra.mxu0 %v337
    %436 = vmatprep.subr.bf16.mxu0 %v342
    %437 = vmatpush1.bf16.msra.mxu0 %v341
    %438 = vmatprep.subr.bf16.mxu0 %v346
    %439 = vmatpush1.bf16.msra.mxu0 %v345
    %440 = vmatprep.subr.bf16.mxu0 %v350
    %441 = vmatpush1.bf16.msra.mxu0 %v349
    %442 = vmatprep.subr.bf16.mxu0 %v354
    %443 = vmatpush1.bf16.msra.mxu0 %v353
    %444 = vmatprep.subr.bf16.mxu0 0
    %445 = vmatpush1.bf16.msra.mxu0 0
    %446 = vmatprep.subr.bf16.mxu0 0
    %447 = vmatpush1.bf16.msra.mxu0 0
    %448 = vmatprep.subr.bf16.mxu0 0
    %449 = vmatpush1.bf16.msra.mxu0 0
    %450 = vmatprep.subr.bf16.mxu0 0
    %451 = vmatpush1.bf16.msra.mxu0 0
    %452 = vmatprep.subr.bf16.mxu0 0
    %453 = vmatpush1.bf16.msra.mxu0 0
    %454 = vmatprep.subr.bf16.mxu0 0
    %455 = vmatpush1.bf16.msra.mxu0 0
    %456 = vmatprep.subr.bf16.mxu0 0
    %457 = vmatpush1.bf16.msra.mxu0 0
    %458 = vmatprep.subr.bf16.mxu0 0
    %459 = vmatpush1.bf16.msra.mxu0 0
    %460 = vmatprep.mubr.bf16.mxu0 0
    %461 = vmatmul.mubr.bf16.gmra.mrb[0].mxu0 %v172
    %v462 = vpop.f32.mrb[0].mxu0
    %v463 = vadd.f32 %v218, %v462
    %v464 = vpop.f32.mrb[0].mxu0
    %v465 = vadd.f32 %v222, %v464
    %v466 = vpop.f32.mrb[0].mxu0
    %v467 = vpop.f32.mrb[0].mxu0
    %468 = vdwg.mxu0
    %v469 = vmax.f32 %v422, 0.0
    %v470 = vmax.f32 %v424, 0.0
    %v471 = vmax.f32 %v463, 0.0
    %v472 = vmax.f32 %v465, 0.0
    %v473 = vpack.c.bf16 %v469, %v469
    %v474 = vpack.c.bf16 %v470, %v470
    %v475 = vpack.c.bf16 %v471, %v471
    %v476 = vpack.c.bf16 %v472, %v472
    %v477 = vld [vmem:[#allocation10] sm:$0xff]
    %v478 = vld [vmem:[#allocation10 + $0x8] sm:$0xff]
    %v479 = vld [vmem:[#allocation10 + $0x10] sm:$0xff]
    %v480 = vld [vmem:[#allocation10 + $0x18] sm:$0xff]
    %v481 = vld [vmem:[#allocation10 + $0x20] sm:$0xff]
    %v482 = vld [vmem:[#allocation10 + $0x28] sm:$0xff]
    %v483 = vld [vmem:[#allocation10 + $0x30] sm:$0xff]
    %v484 = vld [vmem:[#allocation10 + $0x38] sm:$0xff]
    %v485 = vld [vmem:[#allocation10 + $0x40] sm:$0xff]
    %v486 = vld [vmem:[#allocation10 + $0x48] sm:$0xff]
    %v487 = vld [vmem:[#allocation10 + $0x50] sm:$0xff]
    %v488 = vld [vmem:[#allocation10 + $0x58] sm:$0xff]
    %v489 = vld [vmem:[#allocation10 + $0x60] sm:$0xff]
    %v490 = vld [vmem:[#allocation10 + $0x68] sm:$0xff]
    %v491 = vld [vmem:[#allocation10 + $0x70] sm:$0xff]
    %v492 = vld [vmem:[#allocation10 + $0x78] sm:$0xff]
    %v493 = vld [vmem:[#allocation10 + $0x80] sm:$0xff]
    %v494 = vld [vmem:[#allocation10 + $0x88] sm:$0xff]
    %v495 = vld [vmem:[#allocation10 + $0x90] sm:$0xff]
    %v496 = vld [vmem:[#allocation10 + $0x98] sm:$0xff]
    %v497 = vld [vmem:[#allocation10 + $0xa0] sm:$0xff]
    %v498 = vld [vmem:[#allocation10 + $0xa8] sm:$0xff]
    %v499 = vld [vmem:[#allocation10 + $0xb0] sm:$0xff]
    %v500 = vld [vmem:[#allocation10 + $0xb8] sm:$0xff]
    %v501 = vld [vmem:[#allocation10 + $0xc0] sm:$0xff]
    %v502 = vld [vmem:[#allocation10 + $0xc8] sm:$0xff]
    %v503 = vld [vmem:[#allocation10 + $0xd0] sm:$0xff]
    %v504 = vld [vmem:[#allocation10 + $0xd8] sm:$0xff]
    %v505 = vld [vmem:[#allocation10 + $0xe0] sm:$0xff]
    %v506 = vld [vmem:[#allocation10 + $0xe8] sm:$0xff]
    %v507 = vld [vmem:[#allocation10 + $0xf0] sm:$0xff]
    %v508 = vld [vmem:[#allocation10 + $0xf8] sm:$0xff]
    %v509 = vld [vmem:[#allocation10 + $0x100] sm:$0xff]
    %v510 = vld [vmem:[#allocation10 + $0x108] sm:$0xff]
    %v511 = vld [vmem:[#allocation10 + $0x110] sm:$0xff]
    %v512 = vld [vmem:[#allocation10 + $0x118] sm:$0xff]
    %v513 = vld [vmem:[#allocation10 + $0x120] sm:$0xff]
    %v514 = vld [vmem:[#allocation10 + $0x128] sm:$0xff]
    %v515 = vld [vmem:[#allocation10 + $0x130] sm:$0xff]
    %v516 = vld [vmem:[#allocation10 + $0x138] sm:$0xff]
    %v517 = vld [vmem:[#allocation10 + $0x140] sm:$0xff]
    %v518 = vld [vmem:[#allocation10 + $0x148] sm:$0xff]
    %v519 = vld [vmem:[#allocation10 + $0x150] sm:$0xff]
    %v520 = vld [vmem:[#allocation10 + $0x158] sm:$0xff]
    %v521 = vld [vmem:[#allocation10 + $0x160] sm:$0xff]
    %v522 = vld [vmem:[#allocation10 + $0x168] sm:$0xff]
    %v523 = vld [vmem:[#allocation10 + $0x170] sm:$0xff]
    %v524 = vld [vmem:[#allocation10 + $0x178] sm:$0xff]
    %v525 = vld [vmem:[#allocation10 + $0x180] sm:$0xff]
    %v526 = vld [vmem:[#allocation10 + $0x188] sm:$0xff]
    %v527 = vld [vmem:[#allocation10 + $0x190] sm:$0xff]
    %v528 = vld [vmem:[#allocation10 + $0x198] sm:$0xff]
    %v529 = vld [vmem:[#allocation10 + $0x1a0] sm:$0xff]
    %v530 = vld [vmem:[#allocation10 + $0x1a8] sm:$0xff]
    %v531 = vld [vmem:[#allocation10 + $0x1b0] sm:$0xff]
    %v532 = vld [vmem:[#allocation10 + $0x1b8] sm:$0xff]
    %v533 = vld [vmem:[#allocation10 + $0x1c0] sm:$0xff]
    %v534 = vld [vmem:[#allocation10 + $0x1c8] sm:$0xff]
    %v535 = vld [vmem:[#allocation10 + $0x1d0] sm:$0xff]
    %v536 = vld [vmem:[#allocation10 + $0x1d8] sm:$0xff]
    %v537 = vld [vmem:[#allocation10 + $0x1e0] sm:$0xff]
    %v538 = vld [vmem:[#allocation10 + $0x1e8] sm:$0xff]
    %v539 = vld [vmem:[#allocation10 + $0x1f0] sm:$0xff]
    %v540 = vld [vmem:[#allocation10 + $0x1f8] sm:$0xff]
    %v541 = vld [vmem:[#allocation10 + $0x200] sm:$0xff]
    %v542 = vld [vmem:[#allocation10 + $0x208] sm:$0xff]
    %v543 = vld [vmem:[#allocation10 + $0x210] sm:$0xff]
    %v544 = vld [vmem:[#allocation10 + $0x218] sm:$0xff]
    %v545 = vld [vmem:[#allocation10 + $0x220] sm:$0xff]
    %v546 = vld [vmem:[#allocation10 + $0x228] sm:$0xff]
    %v547 = vld [vmem:[#allocation10 + $0x230] sm:$0xff]
    %v548 = vld [vmem:[#allocation10 + $0x238] sm:$0xff]
    %v549 = vld [vmem:[#allocation10 + $0x240] sm:$0xff]
    %v550 = vld [vmem:[#allocation10 + $0x248] sm:$0xff]
    %v551 = vld [vmem:[#allocation10 + $0x250] sm:$0xff]
    %v552 = vld [vmem:[#allocation10 + $0x258] sm:$0xff]
    %v553 = vld [vmem:[#allocation10 + $0x260] sm:$0xff]
    %v554 = vld [vmem:[#allocation10 + $0x268] sm:$0xff]
    %v555 = vld [vmem:[#allocation10 + $0x270] sm:$0xff]
    %v556 = vld [vmem:[#allocation10 + $0x278] sm:$0xff]
    %v557 = vld [vmem:[#allocation10 + $0x280] sm:$0xff]
    %v558 = vld [vmem:[#allocation10 + $0x288] sm:$0xff]
    %v559 = vld [vmem:[#allocation10 + $0x290] sm:$0xff]
    %v560 = vld [vmem:[#allocation10 + $0x298] sm:$0xff]
    %v561 = vld [vmem:[#allocation10 + $0x2a0] sm:$0xff]
    %v562 = vld [vmem:[#allocation10 + $0x2a8] sm:$0xff]
    %v563 = vld [vmem:[#allocation10 + $0x2b0] sm:$0xff]
    %v564 = vld [vmem:[#allocation10 + $0x2b8] sm:$0xff]
    %v565 = vld [vmem:[#allocation10 + $0x2c0] sm:$0xff]
    %v566 = vld [vmem:[#allocation10 + $0x2c8] sm:$0xff]
    %v567 = vld [vmem:[#allocation10 + $0x2d0] sm:$0xff]
    %v568 = vld [vmem:[#allocation10 + $0x2d8] sm:$0xff]
    %v569 = vld [vmem:[#allocation10 + $0x2e0] sm:$0xff]
    %v570 = vld [vmem:[#allocation10 + $0x2e8] sm:$0xff]
    %v571 = vld [vmem:[#allocation10 + $0x2f0] sm:$0xff]
    %v572 = vld [vmem:[#allocation10 + $0x2f8] sm:$0xff]
    %v573 = vld [vmem:[#allocation10 + $0x300] sm:$0xff]
    %v574 = vld [vmem:[#allocation10 + $0x308] sm:$0xff]
    %v575 = vld [vmem:[#allocation10 + $0x310] sm:$0xff]
    %v576 = vld [vmem:[#allocation10 + $0x318] sm:$0xff]
    %v577 = vld [vmem:[#allocation10 + $0x320] sm:$0xff]
    %v578 = vld [vmem:[#allocation10 + $0x328] sm:$0xff]
    %v579 = vld [vmem:[#allocation10 + $0x330] sm:$0xff]
    %v580 = vld [vmem:[#allocation10 + $0x338] sm:$0xff]
    %v581 = vld [vmem:[#allocation10 + $0x340] sm:$0xff]
    %v582 = vld [vmem:[#allocation10 + $0x348] sm:$0xff]
    %v583 = vld [vmem:[#allocation10 + $0x350] sm:$0xff]
    %v584 = vld [vmem:[#allocation10 + $0x358] sm:$0xff]
    %v585 = vld [vmem:[#allocation10 + $0x360] sm:$0xff]
    %v586 = vld [vmem:[#allocation10 + $0x368] sm:$0xff]
    %v587 = vld [vmem:[#allocation10 + $0x370] sm:$0xff]
    %v588 = vld [vmem:[#allocation10 + $0x378] sm:$0xff]
    %v589 = vld [vmem:[#allocation10 + $0x380] sm:$0xff]
    %v590 = vld [vmem:[#allocation10 + $0x388] sm:$0xff]
    %v591 = vld [vmem:[#allocation10 + $0x390] sm:$0xff]
    %v592 = vld [vmem:[#allocation10 + $0x398] sm:$0xff]
    %v593 = vld [vmem:[#allocation10 + $0x3a0] sm:$0xff]
    %v594 = vld [vmem:[#allocation10 + $0x3a8] sm:$0xff]
    %v595 = vld [vmem:[#allocation10 + $0x3b0] sm:$0xff]
    %v596 = vld [vmem:[#allocation10 + $0x3b8] sm:$0xff]
    %v597 = vld [vmem:[#allocation10 + $0x3c0] sm:$0xff]
    %v598 = vld [vmem:[#allocation10 + $0x3c8] sm:$0xff]
    %v599 = vld [vmem:[#allocation10 + $0x3d0] sm:$0xff]
    %v600 = vld [vmem:[#allocation10 + $0x3d8] sm:$0xff]
    %v601 = vld [vmem:[#allocation10 + $0x3e0] sm:$0xff]
    %v602 = vld [vmem:[#allocation10 + $0x3e8] sm:$0xff]
    %v603 = vld [vmem:[#allocation10 + $0x3f0] sm:$0xff]
    %v604 = vld [vmem:[#allocation10 + $0x3f8] sm:$0xff]
    %v605 = vld [vmem:[%s6] sm:$0xf]
    %v607 = vlaneseq
    %v608 = vshrl.u32 %v607, 7
    %v609 = vsub.s32 0, %v608
    %v610 = vrot.slane %v605, %v609
    %v611 = vlaneseq
    %v612 = vshrl.u32 %v611, 7
    %v613 = vsub.s32 1, %v612
    %v614 = vrot.slane %v605, %v613
    %v615 = vlaneseq
    %v616 = vshrl.u32 %v615, 7
    %v617 = vsub.s32 2, %v616
    %v618 = vrot.slane %v605, %v617
    %v619 = vlaneseq
    %v620 = vshrl.u32 %v619, 7
    %v621 = vsub.s32 3, %v620
    %v622 = vrot.slane %v605, %v621
    %v755 = vunpack.c.l.b16 %v477
    %v756 = vunpack.c.h.b16 %v477
    %v757 = vunpack.c.l.b16 %v478
    %v758 = vunpack.c.h.b16 %v478
    %v759 = vunpack.c.l.b16 %v479
    %v760 = vunpack.c.h.b16 %v479
    %v761 = vunpack.c.l.b16 %v480
    %v762 = vunpack.c.h.b16 %v480
    %v763 = vunpack.c.l.b16 %v481
    %v764 = vunpack.c.h.b16 %v481
    %v765 = vunpack.c.l.b16 %v482
    %v766 = vunpack.c.h.b16 %v482
    %v767 = vunpack.c.l.b16 %v483
    %v768 = vunpack.c.h.b16 %v483
    %v769 = vunpack.c.l.b16 %v484
    %v770 = vunpack.c.h.b16 %v484
    %v771 = vunpack.c.l.b16 %v485
    %v772 = vunpack.c.h.b16 %v485
    %v773 = vunpack.c.l.b16 %v486
    %v774 = vunpack.c.h.b16 %v486
    %v775 = vunpack.c.l.b16 %v487
    %v776 = vunpack.c.h.b16 %v487
    %v777 = vunpack.c.l.b16 %v488
    %v778 = vunpack.c.h.b16 %v488
    %v779 = vunpack.c.l.b16 %v489
    %v780 = vunpack.c.h.b16 %v489
    %v781 = vunpack.c.l.b16 %v490
    %v782 = vunpack.c.h.b16 %v490
    %v783 = vunpack.c.l.b16 %v491
    %v784 = vunpack.c.h.b16 %v491
    %v785 = vunpack.c.l.b16 %v492
    %v786 = vunpack.c.h.b16 %v492
    %v787 = vunpack.c.l.b16 %v493
    %v788 = vunpack.c.h.b16 %v493
    %v789 = vunpack.c.l.b16 %v494
    %v790 = vunpack.c.h.b16 %v494
    %v791 = vunpack.c.l.b16 %v495
    %v792 = vunpack.c.h.b16 %v495
    %v793 = vunpack.c.l.b16 %v496
    %v794 = vunpack.c.h.b16 %v496
    %v795 = vunpack.c.l.b16 %v497
    %v796 = vunpack.c.h.b16 %v497
    %v797 = vunpack.c.l.b16 %v498
    %v798 = vunpack.c.h.b16 %v498
    %v799 = vunpack.c.l.b16 %v499
    %v800 = vunpack.c.h.b16 %v499
    %v801 = vunpack.c.l.b16 %v500
    %v802 = vunpack.c.h.b16 %v500
    %v803 = vunpack.c.l.b16 %v501
    %v804 = vunpack.c.h.b16 %v501
    %v805 = vunpack.c.l.b16 %v502
    %v806 = vunpack.c.h.b16 %v502
    %v807 = vunpack.c.l.b16 %v503
    %v808 = vunpack.c.h.b16 %v503
    %v809 = vunpack.c.l.b16 %v504
    %v810 = vunpack.c.h.b16 %v504
    %v811 = vunpack.c.l.b16 %v505
    %v812 = vunpack.c.h.b16 %v505
    %v813 = vunpack.c.l.b16 %v506
    %v814 = vunpack.c.h.b16 %v506
    %v815 = vunpack.c.l.b16 %v507
    %v816 = vunpack.c.h.b16 %v507
    %v817 = vunpack.c.l.b16 %v508
    %v818 = vunpack.c.h.b16 %v508
    %v819 = vunpack.c.l.b16 %v509
    %v820 = vunpack.c.h.b16 %v509
    %v821 = vunpack.c.l.b16 %v510
    %v822 = vunpack.c.h.b16 %v510
    %v823 = vunpack.c.l.b16 %v511
    %v824 = vunpack.c.h.b16 %v511
    %v825 = vunpack.c.l.b16 %v512
    %v826 = vunpack.c.h.b16 %v512
    %v827 = vunpack.c.l.b16 %v513
    %v828 = vunpack.c.h.b16 %v513
    %v829 = vunpack.c.l.b16 %v514
    %v830 = vunpack.c.h.b16 %v514
    %v831 = vunpack.c.l.b16 %v515
    %v832 = vunpack.c.h.b16 %v515
    %v833 = vunpack.c.l.b16 %v516
    %v834 = vunpack.c.h.b16 %v516
    %v835 = vunpack.c.l.b16 %v517
    %v836 = vunpack.c.h.b16 %v517
    %v837 = vunpack.c.l.b16 %v518
    %v838 = vunpack.c.h.b16 %v518
    %v839 = vunpack.c.l.b16 %v519
    %v840 = vunpack.c.h.b16 %v519
    %v841 = vunpack.c.l.b16 %v520
    %v842 = vunpack.c.h.b16 %v520
    %v843 = vunpack.c.l.b16 %v521
    %v844 = vunpack.c.h.b16 %v521
    %v845 = vunpack.c.l.b16 %v522
    %v846 = vunpack.c.h.b16 %v522
    %v847 = vunpack.c.l.b16 %v523
    %v848 = vunpack.c.h.b16 %v523
    %v849 = vunpack.c.l.b16 %v524
    %v850 = vunpack.c.h.b16 %v524
    %v851 = vunpack.c.l.b16 %v525
    %v852 = vunpack.c.h.b16 %v525
    %v853 = vunpack.c.l.b16 %v526
    %v854 = vunpack.c.h.b16 %v526
    %v855 = vunpack.c.l.b16 %v527
    %v856 = vunpack.c.h.b16 %v527
    %v857 = vunpack.c.l.b16 %v528
    %v858 = vunpack.c.h.b16 %v528
    %v859 = vunpack.c.l.b16 %v529
    %v860 = vunpack.c.h.b16 %v529
    %v861 = vunpack.c.l.b16 %v530
    %v862 = vunpack.c.h.b16 %v530
    %v863 = vunpack.c.l.b16 %v531
    %v864 = vunpack.c.h.b16 %v531
    %v865 = vunpack.c.l.b16 %v532
    %v866 = vunpack.c.h.b16 %v532
    %v867 = vunpack.c.l.b16 %v533
    %v868 = vunpack.c.h.b16 %v533
    %v869 = vunpack.c.l.b16 %v534
    %v870 = vunpack.c.h.b16 %v534
    %v871 = vunpack.c.l.b16 %v535
    %v872 = vunpack.c.h.b16 %v535
    %v873 = vunpack.c.l.b16 %v536
    %v874 = vunpack.c.h.b16 %v536
    %v875 = vunpack.c.l.b16 %v537
    %v876 = vunpack.c.h.b16 %v537
    %v877 = vunpack.c.l.b16 %v538
    %v878 = vunpack.c.h.b16 %v538
    %v879 = vunpack.c.l.b16 %v539
    %v880 = vunpack.c.h.b16 %v539
    %v881 = vunpack.c.l.b16 %v540
    %v882 = vunpack.c.h.b16 %v540
    %v883 = vunpack.c.l.b16 %v541
    %v884 = vunpack.c.h.b16 %v541
    %v885 = vunpack.c.l.b16 %v542
    %v886 = vunpack.c.h.b16 %v542
    %v887 = vunpack.c.l.b16 %v543
    %v888 = vunpack.c.h.b16 %v543
    %v889 = vunpack.c.l.b16 %v544
    %v890 = vunpack.c.h.b16 %v544
    %v891 = vunpack.c.l.b16 %v545
    %v892 = vunpack.c.h.b16 %v545
    %v893 = vunpack.c.l.b16 %v546
    %v894 = vunpack.c.h.b16 %v546
    %v895 = vunpack.c.l.b16 %v547
    %v896 = vunpack.c.h.b16 %v547
    %v897 = vunpack.c.l.b16 %v548
    %v898 = vunpack.c.h.b16 %v548
    %v899 = vunpack.c.l.b16 %v549
    %v900 = vunpack.c.h.b16 %v549
    %v901 = vunpack.c.l.b16 %v550
    %v902 = vunpack.c.h.b16 %v550
    %v903 = vunpack.c.l.b16 %v551
    %v904 = vunpack.c.h.b16 %v551
    %v905 = vunpack.c.l.b16 %v552
    %v906 = vunpack.c.h.b16 %v552
    %v907 = vunpack.c.l.b16 %v553
    %v908 = vunpack.c.h.b16 %v553
    %v909 = vunpack.c.l.b16 %v554
    %v910 = vunpack.c.h.b16 %v554
    %v911 = vunpack.c.l.b16 %v555
    %v912 = vunpack.c.h.b16 %v555
    %v913 = vunpack.c.l.b16 %v556
    %v914 = vunpack.c.h.b16 %v556
    %v915 = vunpack.c.l.b16 %v557
    %v916 = vunpack.c.h.b16 %v557
    %v917 = vunpack.c.l.b16 %v558
    %v918 = vunpack.c.h.b16 %v558
    %v919 = vunpack.c.l.b16 %v559
    %v920 = vunpack.c.h.b16 %v559
    %v921 = vunpack.c.l.b16 %v560
    %v922 = vunpack.c.h.b16 %v560
    %v923 = vunpack.c.l.b16 %v561
    %v924 = vunpack.c.h.b16 %v561
    %v925 = vunpack.c.l.b16 %v562
    %v926 = vunpack.c.h.b16 %v562
    %v927 = vunpack.c.l.b16 %v563
    %v928 = vunpack.c.h.b16 %v563
    %v929 = vunpack.c.l.b16 %v564
    %v930 = vunpack.c.h.b16 %v564
    %v931 = vunpack.c.l.b16 %v565
    %v932 = vunpack.c.h.b16 %v565
    %v933 = vunpack.c.l.b16 %v566
    %v934 = vunpack.c.h.b16 %v566
    %v935 = vunpack.c.l.b16 %v567
    %v936 = vunpack.c.h.b16 %v567
    %v937 = vunpack.c.l.b16 %v568
    %v938 = vunpack.c.h.b16 %v568
    %v939 = vunpack.c.l.b16 %v569
    %v940 = vunpack.c.h.b16 %v569
    %v941 = vunpack.c.l.b16 %v570
    %v942 = vunpack.c.h.b16 %v570
    %v943 = vunpack.c.l.b16 %v571
    %v944 = vunpack.c.h.b16 %v571
    %v945 = vunpack.c.l.b16 %v572
    %v946 = vunpack.c.h.b16 %v572
    %v947 = vunpack.c.l.b16 %v573
    %v948 = vunpack.c.h.b16 %v573
    %v949 = vunpack.c.l.b16 %v574
    %v950 = vunpack.c.h.b16 %v574
    %v951 = vunpack.c.l.b16 %v575
    %v952 = vunpack.c.h.b16 %v575
    %v953 = vunpack.c.l.b16 %v576
    %v954 = vunpack.c.h.b16 %v576
    %v955 = vunpack.c.l.b16 %v577
    %v956 = vunpack.c.h.b16 %v577
    %v957 = vunpack.c.l.b16 %v578
    %v958 = vunpack.c.h.b16 %v578
    %v959 = vunpack.c.l.b16 %v579
    %v960 = vunpack.c.h.b16 %v579
    %v961 = vunpack.c.l.b16 %v580
    %v962 = vunpack.c.h.b16 %v580
    %v963 = vunpack.c.l.b16 %v581
    %v964 = vunpack.c.h.b16 %v581
    %v965 = vunpack.c.l.b16 %v582
    %v966 = vunpack.c.h.b16 %v582
    %v967 = vunpack.c.l.b16 %v583
    %v968 = vunpack.c.h.b16 %v583
    %v969 = vunpack.c.l.b16 %v584
    %v970 = vunpack.c.h.b16 %v584
    %v971 = vunpack.c.l.b16 %v585
    %v972 = vunpack.c.h.b16 %v585
    %v973 = vunpack.c.l.b16 %v586
    %v974 = vunpack.c.h.b16 %v586
    %v975 = vunpack.c.l.b16 %v587
    %v976 = vunpack.c.h.b16 %v587
    %v977 = vunpack.c.l.b16 %v588
    %v978 = vunpack.c.h.b16 %v588
    %v979 = vunpack.c.l.b16 %v589
    %v980 = vunpack.c.h.b16 %v589
    %v981 = vunpack.c.l.b16 %v590
    %v982 = vunpack.c.h.b16 %v590
    %v983 = vunpack.c.l.b16 %v591
    %v984 = vunpack.c.h.b16 %v591
    %v985 = vunpack.c.l.b16 %v592
    %v986 = vunpack.c.h.b16 %v592
    %v987 = vunpack.c.l.b16 %v593
    %v988 = vunpack.c.h.b16 %v593
    %v989 = vunpack.c.l.b16 %v594
    %v990 = vunpack.c.h.b16 %v594
    %v991 = vunpack.c.l.b16 %v595
    %v992 = vunpack.c.h.b16 %v595
    %v993 = vunpack.c.l.b16 %v596
    %v994 = vunpack.c.h.b16 %v596
    %v995 = vunpack.c.l.b16 %v597
    %v996 = vunpack.c.h.b16 %v597
    %v997 = vunpack.c.l.b16 %v598
    %v998 = vunpack.c.h.b16 %v598
    %v999 = vunpack.c.l.b16 %v599
    %v1000 = vunpack.c.h.b16 %v599
    %v1001 = vunpack.c.l.b16 %v600
    %v1002 = vunpack.c.h.b16 %v600
    %v1003 = vunpack.c.l.b16 %v601
    %v1004 = vunpack.c.h.b16 %v601
    %v1005 = vunpack.c.l.b16 %v602
    %v1006 = vunpack.c.h.b16 %v602
    %v1007 = vunpack.c.l.b16 %v603
    %v1008 = vunpack.c.h.b16 %v603
    %v1009 = vunpack.c.l.b16 %v604
    %v1010 = vunpack.c.h.b16 %v604
    %v1011 = vpack.c.b16 %v759, %v755
    %v1012 = vpack.c.b16 %v760, %v756
    %v1013 = vpack.c.b16 %v761, %v757
    %v1014 = vpack.c.b16 %v762, %v758
    %v1015 = vpack.c.b16 %v767, %v763
    %v1016 = vpack.c.b16 %v768, %v764
    %v1017 = vpack.c.b16 %v769, %v765
    %v1018 = vpack.c.b16 %v770, %v766
    %v1019 = vpack.c.b16 %v775, %v771
    %v1020 = vpack.c.b16 %v776, %v772
    %v1021 = vpack.c.b16 %v777, %v773
    %v1022 = vpack.c.b16 %v778, %v774
    %v1023 = vpack.c.b16 %v783, %v779
    %v1024 = vpack.c.b16 %v784, %v780
    %v1025 = vpack.c.b16 %v785, %v781
    %v1026 = vpack.c.b16 %v786, %v782
    %v1027 = vpack.c.b16 %v791, %v787
    %v1028 = vpack.c.b16 %v792, %v788
    %v1029 = vpack.c.b16 %v793, %v789
    %v1030 = vpack.c.b16 %v794, %v790
    %v1031 = vpack.c.b16 %v799, %v795
    %v1032 = vpack.c.b16 %v800, %v796
    %v1033 = vpack.c.b16 %v801, %v797
    %v1034 = vpack.c.b16 %v802, %v798
    %v1035 = vpack.c.b16 %v807, %v803
    %v1036 = vpack.c.b16 %v808, %v804
    %v1037 = vpack.c.b16 %v809, %v805
    %v1038 = vpack.c.b16 %v810, %v806
    %v1039 = vpack.c.b16 %v815, %v811
    %v1040 = vpack.c.b16 %v816, %v812
    %v1041 = vpack.c.b16 %v817, %v813
    %v1042 = vpack.c.b16 %v818, %v814
    %v1043 = vpack.c.b16 %v823, %v819
    %v1044 = vpack.c.b16 %v824, %v820
    %v1045 = vpack.c.b16 %v825, %v821
    %v1046 = vpack.c.b16 %v826, %v822
    %v1047 = vpack.c.b16 %v831, %v827
    %v1048 = vpack.c.b16 %v832, %v828
    %v1049 = vpack.c.b16 %v833, %v829
    %v1050 = vpack.c.b16 %v834, %v830
    %v1051 = vpack.c.b16 %v839, %v835
    %v1052 = vpack.c.b16 %v840, %v836
    %v1053 = vpack.c.b16 %v841, %v837
    %v1054 = vpack.c.b16 %v842, %v838
    %v1055 = vpack.c.b16 %v847, %v843
    %v1056 = vpack.c.b16 %v848, %v844
    %v1057 = vpack.c.b16 %v849, %v845
    %v1058 = vpack.c.b16 %v850, %v846
    %v1059 = vpack.c.b16 %v855, %v851
    %v1060 = vpack.c.b16 %v856, %v852
    %v1061 = vpack.c.b16 %v857, %v853
    %v1062 = vpack.c.b16 %v858, %v854
    %v1063 = vpack.c.b16 %v863, %v859
    %v1064 = vpack.c.b16 %v864, %v860
    %v1065 = vpack.c.b16 %v865, %v861
    %v1066 = vpack.c.b16 %v866, %v862
    %v1067 = vpack.c.b16 %v871, %v867
    %v1068 = vpack.c.b16 %v872, %v868
    %v1069 = vpack.c.b16 %v873, %v869
    %v1070 = vpack.c.b16 %v874, %v870
    %v1071 = vpack.c.b16 %v879, %v875
    %v1072 = vpack.c.b16 %v880, %v876
    %v1073 = vpack.c.b16 %v881, %v877
    %v1074 = vpack.c.b16 %v882, %v878
    %v1075 = vpack.c.b16 %v887, %v883
    %v1076 = vpack.c.b16 %v888, %v884
    %v1077 = vpack.c.b16 %v889, %v885
    %v1078 = vpack.c.b16 %v890, %v886
    %v1079 = vpack.c.b16 %v895, %v891
    %v1080 = vpack.c.b16 %v896, %v892
    %v1081 = vpack.c.b16 %v897, %v893
    %v1082 = vpack.c.b16 %v898, %v894
    %v1083 = vpack.c.b16 %v903, %v899
    %v1084 = vpack.c.b16 %v904, %v900
    %v1085 = vpack.c.b16 %v905, %v901
    %v1086 = vpack.c.b16 %v906, %v902
    %v1087 = vpack.c.b16 %v911, %v907
    %v1088 = vpack.c.b16 %v912, %v908
    %v1089 = vpack.c.b16 %v913, %v909
    %v1090 = vpack.c.b16 %v914, %v910
    %v1091 = vpack.c.b16 %v919, %v915
    %v1092 = vpack.c.b16 %v920, %v916
    %v1093 = vpack.c.b16 %v921, %v917
    %v1094 = vpack.c.b16 %v922, %v918
    %v1095 = vpack.c.b16 %v927, %v923
    %v1096 = vpack.c.b16 %v928, %v924
    %v1097 = vpack.c.b16 %v929, %v925
    %v1098 = vpack.c.b16 %v930, %v926
    %v1099 = vpack.c.b16 %v935, %v931
    %v1100 = vpack.c.b16 %v936, %v932
    %v1101 = vpack.c.b16 %v937, %v933
    %v1102 = vpack.c.b16 %v938, %v934
    %v1103 = vpack.c.b16 %v943, %v939
    %v1104 = vpack.c.b16 %v944, %v940
    %v1105 = vpack.c.b16 %v945, %v941
    %v1106 = vpack.c.b16 %v946, %v942
    %v1107 = vpack.c.b16 %v951, %v947
    %v1108 = vpack.c.b16 %v952, %v948
    %v1109 = vpack.c.b16 %v953, %v949
    %v1110 = vpack.c.b16 %v954, %v950
    %v1111 = vpack.c.b16 %v959, %v955
    %v1112 = vpack.c.b16 %v960, %v956
    %v1113 = vpack.c.b16 %v961, %v957
    %v1114 = vpack.c.b16 %v962, %v958
    %v1115 = vpack.c.b16 %v967, %v963
    %v1116 = vpack.c.b16 %v968, %v964
    %v1117 = vpack.c.b16 %v969, %v965
    %v1118 = vpack.c.b16 %v970, %v966
    %v1119 = vpack.c.b16 %v975, %v971
    %v1120 = vpack.c.b16 %v976, %v972
    %v1121 = vpack.c.b16 %v977, %v973
    %v1122 = vpack.c.b16 %v978, %v974
    %v1123 = vpack.c.b16 %v983, %v979
    %v1124 = vpack.c.b16 %v984, %v980
    %v1125 = vpack.c.b16 %v985, %v981
    %v1126 = vpack.c.b16 %v986, %v982
    %v1127 = vpack.c.b16 %v991, %v987
    %v1128 = vpack.c.b16 %v992, %v988
    %v1129 = vpack.c.b16 %v993, %v989
    %v1130 = vpack.c.b16 %v994, %v990
    %v1131 = vpack.c.b16 %v999, %v995
    %v1132 = vpack.c.b16 %v1000, %v996
    %v1133 = vpack.c.b16 %v1001, %v997
    %v1134 = vpack.c.b16 %v1002, %v998
    %v1135 = vpack.c.b16 %v1007, %v1003
    %v1136 = vpack.c.b16 %v1008, %v1004
    %v1137 = vpack.c.b16 %v1009, %v1005
    %v1138 = vpack.c.b16 %v1010, %v1006
    %1267 = vmatprep.subr.bf16.mxu0 %v1012
    %1268 = vmatpush1.bf16.msra.mxu0 %v1011
    %1269 = vmatprep.subr.bf16.mxu0 %v1016
    %1270 = vmatpush1.bf16.msra.mxu0 %v1015
    %1271 = vmatprep.subr.bf16.mxu0 %v1020
    %1272 = vmatpush1.bf16.msra.mxu0 %v1019
    %1273 = vmatprep.subr.bf16.mxu0 %v1024
    %1274 = vmatpush1.bf16.msra.mxu0 %v1023
    %1275 = vmatprep.subr.bf16.mxu0 %v1028
    %1276 = vmatpush1.bf16.msra.mxu0 %v1027
    %1277 = vmatprep.subr.bf16.mxu0 %v1032
    %1278 = vmatpush1.bf16.msra.mxu0 %v1031
    %1279 = vmatprep.subr.bf16.mxu0 %v1036
    %1280 = vmatpush1.bf16.msra.mxu0 %v1035
    %1281 = vmatprep.subr.bf16.mxu0 %v1040
    %1282 = vmatpush1.bf16.msra.mxu0 %v1039
    %1283 = vmatprep.subr.bf16.mxu0 %v1044
    %1284 = vmatpush1.bf16.msra.mxu0 %v1043
    %1285 = vmatprep.subr.bf16.mxu0 %v1048
    %1286 = vmatpush1.bf16.msra.mxu0 %v1047
    %1287 = vmatprep.subr.bf16.mxu0 %v1052
    %1288 = vmatpush1.bf16.msra.mxu0 %v1051
    %1289 = vmatprep.subr.bf16.mxu0 %v1056
    %1290 = vmatpush1.bf16.msra.mxu0 %v1055
    %1291 = vmatprep.subr.bf16.mxu0 %v1060
    %1292 = vmatpush1.bf16.msra.mxu0 %v1059
    %1293 = vmatprep.subr.bf16.mxu0 %v1064
    %1294 = vmatpush1.bf16.msra.mxu0 %v1063
    %1295 = vmatprep.subr.bf16.mxu0 %v1068
    %1296 = vmatpush1.bf16.msra.mxu0 %v1067
    %1297 = vmatprep.subr.bf16.mxu0 %v1072
    %1298 = vmatpush1.bf16.msra.mxu0 %v1071
    %1299 = vmatprep.mubr.bf16.mxu0 %v474
    %1300 = vmatmul.mubr.bf16.gmra.mrb[0].mxu0 %v473
    %v1301 = vpop.f32.mrb[0].mxu0
    %v1302 = vadd.f32 %v610, %v1301
    %v1303 = vpop.f32.mrb[0].mxu0
    %v1304 = vadd.f32 %v614, %v1303
    %v1305 = vpop.f32.mrb[0].mxu0
    %v1306 = vpop.f32.mrb[0].mxu0
    %1307 = vdwg.mxu0
    %1308 = vmatprep.subr.bf16.mxu0 %v1076
    %1309 = vmatpush1.bf16.msra.mxu0 %v1075
    %1310 = vmatprep.subr.bf16.mxu0 %v1080
    %1311 = vmatpush1.bf16.msra.mxu0 %v1079
    %1312 = vmatprep.subr.bf16.mxu0 %v1084
    %1313 = vmatpush1.bf16.msra.mxu0 %v1083
    %1314 = vmatprep.subr.bf16.mxu0 %v1088
    %1315 = vmatpush1.bf16.msra.mxu0 %v1087
    %1316 = vmatprep.subr.bf16.mxu0 %v1092
    %1317 = vmatpush1.bf16.msra.mxu0 %v1091
    %1318 = vmatprep.subr.bf16.mxu0 %v1096
    %1319 = vmatpush1.bf16.msra.mxu0 %v1095
    %1320 = vmatprep.subr.bf16.mxu0 %v1100
    %1321 = vmatpush1.bf16.msra.mxu0 %v1099
    %1322 = vmatprep.subr.bf16.mxu0 %v1104
    %1323 = vmatpush1.bf16.msra.mxu0 %v1103
    %1324 = vmatprep.subr.bf16.mxu0 %v1108
    %1325 = vmatpush1.bf16.msra.mxu0 %v1107
    %1326 = vmatprep.subr.bf16.mxu0 %v1112
    %1327 = vmatpush1.bf16.msra.mxu0 %v1111
    %1328 = vmatprep.subr.bf16.mxu0 %v1116
    %1329 = vmatpush1.bf16.msra.mxu0 %v1115
    %1330 = vmatprep.subr.bf16.mxu0 %v1120
    %1331 = vmatpush1.bf16.msra.mxu0 %v1119
    %1332 = vmatprep.subr.bf16.mxu0 %v1124
    %1333 = vmatpush1.bf16.msra.mxu0 %v1123
    %1334 = vmatprep.subr.bf16.mxu0 %v1128
    %1335 = vmatpush1.bf16.msra.mxu0 %v1127
    %1336 = vmatprep.subr.bf16.mxu0 %v1132
    %1337 = vmatpush1.bf16.msra.mxu0 %v1131
    %1338 = vmatprep.subr.bf16.mxu0 %v1136
    %1339 = vmatpush1.bf16.msra.mxu0 %v1135
    %1340 = vmatprep.mubr.bf16.mxu0 %v476
    %1341 = vmatmul.mubr.bf16.gmra.mrb[0].mxu0 %v475
    %v1342 = vpop.f32.mrb[0].mxu0
    %v1343 = vadd.f32 %v1302, %v1342
    %v1344 = vpop.f32.mrb[0].mxu0
    %v1345 = vadd.f32 %v1304, %v1344
    %v1346 = vpop.f32.mrb[0].mxu0
    %v1347 = vpop.f32.mrb[0].mxu0
    %1348 = vdwg.mxu0
    %1349 = vmatprep.subr.bf16.mxu0 %v1014
    %1350 = vmatpush1.bf16.msra.mxu0 %v1013
    %1351 = vmatprep.subr.bf16.mxu0 %v1018
    %1352 = vmatpush1.bf16.msra.mxu0 %v1017
    %1353 = vmatprep.subr.bf16.mxu0 %v1022
    %1354 = vmatpush1.bf16.msra.mxu0 %v1021
    %1355 = vmatprep.subr.bf16.mxu0 %v1026
    %1356 = vmatpush1.bf16.msra.mxu0 %v1025
    %1357 = vmatprep.subr.bf16.mxu0 %v1030
    %1358 = vmatpush1.bf16.msra.mxu0 %v1029
    %1359 = vmatprep.subr.bf16.mxu0 %v1034
    %1360 = vmatpush1.bf16.msra.mxu0 %v1033
    %1361 = vmatprep.subr.bf16.mxu0 %v1038
    %1362 = vmatpush1.bf16.msra.mxu0 %v1037
    %1363 = vmatprep.subr.bf16.mxu0 %v1042
    %1364 = vmatpush1.bf16.msra.mxu0 %v1041
    %1365 = vmatprep.subr.bf16.mxu0 %v1046
    %1366 = vmatpush1.bf16.msra.mxu0 %v1045
    %1367 = vmatprep.subr.bf16.mxu0 %v1050
    %1368 = vmatpush1.bf16.msra.mxu0 %v1049
    %1369 = vmatprep.subr.bf16.mxu0 %v1054
    %1370 = vmatpush1.bf16.msra.mxu0 %v1053
    %1371 = vmatprep.subr.bf16.mxu0 %v1058
    %1372 = vmatpush1.bf16.msra.mxu0 %v1057
    %1373 = vmatprep.subr.bf16.mxu0 %v1062
    %1374 = vmatpush1.bf16.msra.mxu0 %v1061
    %1375 = vmatprep.subr.bf16.mxu0 %v1066
    %1376 = vmatpush1.bf16.msra.mxu0 %v1065
    %1377 = vmatprep.subr.bf16.mxu0 %v1070
    %1378 = vmatpush1.bf16.msra.mxu0 %v1069
    %1379 = vmatprep.subr.bf16.mxu0 %v1074
    %1380 = vmatpush1.bf16.msra.mxu0 %v1073
    %1381 = vmatprep.mubr.bf16.mxu0 %v474
    %1382 = vmatmul.mubr.bf16.gmra.mrb[0].mxu0 %v473
    %v1383 = vpop.f32.mrb[0].mxu0
    %v1384 = vadd.f32 %v618, %v1383
    %v1385 = vpop.f32.mrb[0].mxu0
    %v1386 = vadd.f32 %v622, %v1385
    %v1387 = vpop.f32.mrb[0].mxu0
    %v1388 = vpop.f32.mrb[0].mxu0
    %1389 = vdwg.mxu0
    %1390 = vmatprep.subr.bf16.mxu0 %v1078
    %1391 = vmatpush1.bf16.msra.mxu0 %v1077
    %1392 = vmatprep.subr.bf16.mxu0 %v1082
    %1393 = vmatpush1.bf16.msra.mxu0 %v1081
    %1394 = vmatprep.subr.bf16.mxu0 %v1086
    %1395 = vmatpush1.bf16.msra.mxu0 %v1085
    %1396 = vmatprep.subr.bf16.mxu0 %v1090
    %1397 = vmatpush1.bf16.msra.mxu0 %v1089
    %1398 = vmatprep.subr.bf16.mxu0 %v1094
    %1399 = vmatpush1.bf16.msra.mxu0 %v1093
    %1400 = vmatprep.subr.bf16.mxu0 %v1098
    %1401 = vmatpush1.bf16.msra.mxu0 %v1097
    %1402 = vmatprep.subr.bf16.mxu0 %v1102
    %1403 = vmatpush1.bf16.msra.mxu0 %v1101
    %1404 = vmatprep.subr.bf16.mxu0 %v1106
    %1405 = vmatpush1.bf16.msra.mxu0 %v1105
    %1406 = vmatprep.subr.bf16.mxu0 %v1110
    %1407 = vmatpush1.bf16.msra.mxu0 %v1109
    %1408 = vmatprep.subr.bf16.mxu0 %v1114
    %1409 = vmatpush1.bf16.msra.mxu0 %v1113
    %1410 = vmatprep.subr.bf16.mxu0 %v1118
    %1411 = vmatpush1.bf16.msra.mxu0 %v1117
    %1412 = vmatprep.subr.bf16.mxu0 %v1122
    %1413 = vmatpush1.bf16.msra.mxu0 %v1121
    %1414 = vmatprep.subr.bf16.mxu0 %v1126
    %1415 = vmatpush1.bf16.msra.mxu0 %v1125
    %1416 = vmatprep.subr.bf16.mxu0 %v1130
    %1417 = vmatpush1.bf16.msra.mxu0 %v1129
    %1418 = vmatprep.subr.bf16.mxu0 %v1134
    %1419 = vmatpush1.bf16.msra.mxu0 %v1133
    %1420 = vmatprep.subr.bf16.mxu0 %v1138
    %1421 = vmatpush1.bf16.msra.mxu0 %v1137
    %1422 = vmatprep.mubr.bf16.mxu0 %v476
    %1423 = vmatmul.mubr.bf16.gmra.mrb[0].mxu0 %v475
    %v1424 = vpop.f32.mrb[0].mxu0
    %v1425 = vadd.f32 %v1384, %v1424
    %v1426 = vpop.f32.mrb[0].mxu0
    %v1427 = vadd.f32 %v1386, %v1426
    %v1428 = vpop.f32.mrb[0].mxu0
    %v1429 = vpop.f32.mrb[0].mxu0
    %1430 = vdwg.mxu0
    %v1431 = vmax.f32 %v1343, 0.0
    %v1432 = vmax.f32 %v1345, 0.0
    %v1433 = vmax.f32 %v1425, 0.0
    %v1434 = vmax.f32 %v1427, 0.0
    %v1435 = vpack.c.bf16 %v1431, %v1431
    %v1436 = vpack.c.bf16 %v1432, %v1432
    %v1437 = vpack.c.bf16 %v1433, %v1433
    %v1438 = vpack.c.bf16 %v1434, %v1434
    %1439 = vmatprep.subr.bf16.mxu0 %v1012
    %1440 = vmatpush1.bf16.msra.mxu0 %v1011
    %1441 = vmatprep.subr.bf16.mxu0 %v1016
    %1442 = vmatpush1.bf16.msra.mxu0 %v1015
    %1443 = vmatprep.subr.bf16.mxu0 %v1020
    %1444 = vmatpush1.bf16.msra.mxu0 %v1019
    %1445 = vmatprep.subr.bf16.mxu0 %v1024
    %1446 = vmatpush1.bf16.msra.mxu0 %v1023
    %1447 = vmatprep.subr.bf16.mxu0 %v1028
    %1448 = vmatpush1.bf16.msra.mxu0 %v1027
    %1449 = vmatprep.subr.bf16.mxu0 %v1032
    %1450 = vmatpush1.bf16.msra.mxu0 %v1031
    %1451 = vmatprep.subr.bf16.mxu0 %v1036
    %1452 = vmatpush1.bf16.msra.mxu0 %v1035
    %1453 = vmatprep.subr.bf16.mxu0 %v1040
    %1454 = vmatpush1.bf16.msra.mxu0 %v1039
    %1455 = vmatprep.subr.bf16.mxu0 %v1044
    %1456 = vmatpush1.bf16.msra.mxu0 %v1043
    %1457 = vmatprep.subr.bf16.mxu0 %v1048
    %1458 = vmatpush1.bf16.msra.mxu0 %v1047
    %1459 = vmatprep.subr.bf16.mxu0 %v1052
    %1460 = vmatpush1.bf16.msra.mxu0 %v1051
    %1461 = vmatprep.subr.bf16.mxu0 %v1056
    %1462 = vmatpush1.bf16.msra.mxu0 %v1055
    %1463 = vmatprep.subr.bf16.mxu0 %v1060
    %1464 = vmatpush1.bf16.msra.mxu0 %v1059
    %1465 = vmatprep.subr.bf16.mxu0 %v1064
    %1466 = vmatpush1.bf16.msra.mxu0 %v1063
    %1467 = vmatprep.subr.bf16.mxu0 %v1068
    %1468 = vmatpush1.bf16.msra.mxu0 %v1067
    %1469 = vmatprep.subr.bf16.mxu0 %v1072
    %1470 = vmatpush1.bf16.msra.mxu0 %v1071
    %1471 = vmatprep.mubr.bf16.mxu0 %v1436
    %1472 = vmatmul.mubr.bf16.gmra.mrb[0].mxu0 %v1435
    %v1473 = vpop.f32.mrb[0].mxu0
    %v1474 = vadd.f32 %v610, %v1473
    %v1475 = vpop.f32.mrb[0].mxu0
    %v1476 = vadd.f32 %v614, %v1475
    %v1477 = vpop.f32.mrb[0].mxu0
    %v1478 = vpop.f32.mrb[0].mxu0
    %1479 = vdwg.mxu0
    %1480 = vmatprep.subr.bf16.mxu0 %v1076
    %1481 = vmatpush1.bf16.msra.mxu0 %v1075
    %1482 = vmatprep.subr.bf16.mxu0 %v1080
    %1483 = vmatpush1.bf16.msra.mxu0 %v1079
    %1484 = vmatprep.subr.bf16.mxu0 %v1084
    %1485 = vmatpush1.bf16.msra.mxu0 %v1083
    %1486 = vmatprep.subr.bf16.mxu0 %v1088
    %1487 = vmatpush1.bf16.msra.mxu0 %v1087
    %1488 = vmatprep.subr.bf16.mxu0 %v1092
    %1489 = vmatpush1.bf16.msra.mxu0 %v1091
    %1490 = vmatprep.subr.bf16.mxu0 %v1096
    %1491 = vmatpush1.bf16.msra.mxu0 %v1095
    %1492 = vmatprep.subr.bf16.mxu0 %v1100
    %1493 = vmatpush1.bf16.msra.mxu0 %v1099
    %1494 = vmatprep.subr.bf16.mxu0 %v1104
    %1495 = vmatpush1.bf16.msra.mxu0 %v1103
    %1496 = vmatprep.subr.bf16.mxu0 %v1108
    %1497 = vmatpush1.bf16.msra.mxu0 %v1107
    %1498 = vmatprep.subr.bf16.mxu0 %v1112
    %1499 = vmatpush1.bf16.msra.mxu0 %v1111
    %1500 = vmatprep.subr.bf16.mxu0 %v1116
    %1501 = vmatpush1.bf16.msra.mxu0 %v1115
    %1502 = vmatprep.subr.bf16.mxu0 %v1120
    %1503 = vmatpush1.bf16.msra.mxu0 %v1119
    %1504 = vmatprep.subr.bf16.mxu0 %v1124
    %1505 = vmatpush1.bf16.msra.mxu0 %v1123
    %1506 = vmatprep.subr.bf16.mxu0 %v1128
    %1507 = vmatpush1.bf16.msra.mxu0 %v1127
    %1508 = vmatprep.subr.bf16.mxu0 %v1132
    %1509 = vmatpush1.bf16.msra.mxu0 %v1131
    %1510 = vmatprep.subr.bf16.mxu0 %v1136
    %1511 = vmatpush1.bf16.msra.mxu0 %v1135
    %1512 = vmatprep.mubr.bf16.mxu0 %v1438
    %1513 = vmatmul.mubr.bf16.gmra.mrb[0].mxu0 %v1437
    %v1514 = vpop.f32.mrb[0].mxu0
    %v1515 = vadd.f32 %v1474, %v1514
    %v1516 = vpop.f32.mrb[0].mxu0
    %v1517 = vadd.f32 %v1476, %v1516
    %v1518 = vpop.f32.mrb[0].mxu0
    %v1519 = vpop.f32.mrb[0].mxu0
    %1520 = vdwg.mxu0
    %1521 = vmatprep.subr.bf16.mxu0 %v1014
    %1522 = vmatpush1.bf16.msra.mxu0 %v1013
    %1523 = vmatprep.subr.bf16.mxu0 %v1018
    %1524 = vmatpush1.bf16.msra.mxu0 %v1017
    %1525 = vmatprep.subr.bf16.mxu0 %v1022
    %1526 = vmatpush1.bf16.msra.mxu0 %v1021
    %1527 = vmatprep.subr.bf16.mxu0 %v1026
    %1528 = vmatpush1.bf16.msra.mxu0 %v1025
    %1529 = vmatprep.subr.bf16.mxu0 %v1030
    %1530 = vmatpush1.bf16.msra.mxu0 %v1029
    %1531 = vmatprep.subr.bf16.mxu0 %v1034
    %1532 = vmatpush1.bf16.msra.mxu0 %v1033
    %1533 = vmatprep.subr.bf16.mxu0 %v1038
    %1534 = vmatpush1.bf16.msra.mxu0 %v1037
    %1535 = vmatprep.subr.bf16.mxu0 %v1042
    %1536 = vmatpush1.bf16.msra.mxu0 %v1041
    %1537 = vmatprep.subr.bf16.mxu0 %v1046
    %1538 = vmatpush1.bf16.msra.mxu0 %v1045
    %1539 = vmatprep.subr.bf16.mxu0 %v1050
    %1540 = vmatpush1.bf16.msra.mxu0 %v1049
    %1541 = vmatprep.subr.bf16.mxu0 %v1054
    %1542 = vmatpush1.bf16.msra.mxu0 %v1053
    %1543 = vmatprep.subr.bf16.mxu0 %v1058
    %1544 = vmatpush1.bf16.msra.mxu0 %v1057
    %1545 = vmatprep.subr.bf16.mxu0 %v1062
    %1546 = vmatpush1.bf16.msra.mxu0 %v1061
    %1547 = vmatprep.subr.bf16.mxu0 %v1066
    %1548 = vmatpush1.bf16.msra.mxu0 %v1065
    %1549 = vmatprep.subr.bf16.mxu0 %v1070
    %1550 = vmatpush1.bf16.msra.mxu0 %v1069
    %1551 = vmatprep.subr.bf16.mxu0 %v1074
    %1552 = vmatpush1.bf16.msra.mxu0 %v1073
    %1553 = vmatprep.mubr.bf16.mxu0 %v1436
    %1554 = vmatmul.mubr.bf16.gmra.mrb[0].mxu0 %v1435
    %v1555 = vpop.f32.mrb[0].mxu0
    %v1556 = vadd.f32 %v618, %v1555
    %v1557 = vpop.f32.mrb[0].mxu0
    %v1558 = vadd.f32 %v622, %v1557
    %v1559 = vpop.f32.mrb[0].mxu0
    %v1560 = vpop.f32.mrb[0].mxu0
    %1561 = vdwg.mxu0
    %1562 = vmatprep.subr.bf16.mxu0 %v1078
    %1563 = vmatpush1.bf16.msra.mxu0 %v1077
    %1564 = vmatprep.subr.bf16.mxu0 %v1082
    %1565 = vmatpush1.bf16.msra.mxu0 %v1081
    %1566 = vmatprep.subr.bf16.mxu0 %v1086
    %1567 = vmatpush1.bf16.msra.mxu0 %v1085
    %1568 = vmatprep.subr.bf16.mxu0 %v1090
    %1569 = vmatpush1.bf16.msra.mxu0 %v1089
    %1570 = vmatprep.subr.bf16.mxu0 %v1094
    %1571 = vmatpush1.bf16.msra.mxu0 %v1093
    %1572 = vmatprep.subr.bf16.mxu0 %v1098
    %1573 = vmatpush1.bf16.msra.mxu0 %v1097
    %1574 = vmatprep.subr.bf16.mxu0 %v1102
    %1575 = vmatpush1.bf16.msra.mxu0 %v1101
    %1576 = vmatprep.subr.bf16.mxu0 %v1106
    %1577 = vmatpush1.bf16.msra.mxu0 %v1105
    %1578 = vmatprep.subr.bf16.mxu0 %v1110
    %1579 = vmatpush1.bf16.msra.mxu0 %v1109
    %1580 = vmatprep.subr.bf16.mxu0 %v1114
    %1581 = vmatpush1.bf16.msra.mxu0 %v1113
    %1582 = vmatprep.subr.bf16.mxu0 %v1118
    %1583 = vmatpush1.bf16.msra.mxu0 %v1117
    %1584 = vmatprep.subr.bf16.mxu0 %v1122
    %1585 = vmatpush1.bf16.msra.mxu0 %v1121
    %1586 = vmatprep.subr.bf16.mxu0 %v1126
    %1587 = vmatpush1.bf16.msra.mxu0 %v1125
    %1588 = vmatprep.subr.bf16.mxu0 %v1130
    %1589 = vmatpush1.bf16.msra.mxu0 %v1129
    %1590 = vmatprep.subr.bf16.mxu0 %v1134
    %1591 = vmatpush1.bf16.msra.mxu0 %v1133
    %1592 = vmatprep.subr.bf16.mxu0 %v1138
    %1593 = vmatpush1.bf16.msra.mxu0 %v1137
    %1594 = vmatprep.mubr.bf16.mxu0 %v1438
    %1595 = vmatmul.mubr.bf16.gmra.mrb[0].mxu0 %v1437
    %v1596 = vpop.f32.mrb[0].mxu0
    %v1597 = vadd.f32 %v1556, %v1596
    %v1598 = vpop.f32.mrb[0].mxu0
    %v1599 = vadd.f32 %v1558, %v1598
    %v1600 = vpop.f32.mrb[0].mxu0
    %v1601 = vpop.f32.mrb[0].mxu0
    %1602 = vdwg.mxu0
    %v1603 = vpack.c.bf16 %v1515, %v1515
    %v1604 = vpack.c.bf16 %v1517, %v1517
    %v1605 = vpack.c.bf16 %v1597, %v1597
    %v1606 = vpack.c.bf16 %v1599, %v1599
    %v1607 = vld [vmem:[#allocation13] sm:$0xff]
    %v1608 = vld [vmem:[#allocation13 + $0x8] sm:$0xff]
    %v1609 = vld [vmem:[#allocation13 + $0x10] sm:$0xff]
    %v1610 = vld [vmem:[#allocation13 + $0x18] sm:$0xff]
    %v1611 = vld [vmem:[#allocation13 + $0x20] sm:$0xff]
    %v1612 = vld [vmem:[#allocation13 + $0x28] sm:$0xff]
    %v1613 = vld [vmem:[#allocation13 + $0x30] sm:$0xff]
    %v1614 = vld [vmem:[#allocation13 + $0x38] sm:$0xff]
    %v1615 = vld [vmem:[#allocation13 + $0x40] sm:$0xff]
    %v1616 = vld [vmem:[#allocation13 + $0x48] sm:$0xff]
    %v1617 = vld [vmem:[#allocation13 + $0x50] sm:$0xff]
    %v1618 = vld [vmem:[#allocation13 + $0x58] sm:$0xff]
    %v1619 = vld [vmem:[#allocation13 + $0x60] sm:$0xff]
    %v1620 = vld [vmem:[#allocation13 + $0x68] sm:$0xff]
    %v1621 = vld [vmem:[#allocation13 + $0x70] sm:$0xff]
    %v1622 = vld [vmem:[#allocation13 + $0x78] sm:$0xff]
    %v1623 = vld [vmem:[#allocation13 + $0x80] sm:$0xff]
    %v1624 = vld [vmem:[#allocation13 + $0x88] sm:$0xff]
    %v1625 = vld [vmem:[#allocation13 + $0x90] sm:$0xff]
    %v1626 = vld [vmem:[#allocation13 + $0x98] sm:$0xff]
    %v1627 = vld [vmem:[#allocation13 + $0xa0] sm:$0xff]
    %v1628 = vld [vmem:[#allocation13 + $0xa8] sm:$0xff]
    %v1629 = vld [vmem:[#allocation13 + $0xb0] sm:$0xff]
    %v1630 = vld [vmem:[#allocation13 + $0xb8] sm:$0xff]
    %v1631 = vld [vmem:[#allocation13 + $0xc0] sm:$0xff]
    %v1632 = vld [vmem:[#allocation13 + $0xc8] sm:$0xff]
    %v1633 = vld [vmem:[#allocation13 + $0xd0] sm:$0xff]
    %v1634 = vld [vmem:[#allocation13 + $0xd8] sm:$0xff]
    %v1635 = vld [vmem:[#allocation13 + $0xe0] sm:$0xff]
    %v1636 = vld [vmem:[#allocation13 + $0xe8] sm:$0xff]
    %v1637 = vld [vmem:[#allocation13 + $0xf0] sm:$0xff]
    %v1638 = vld [vmem:[#allocation13 + $0xf8] sm:$0xff]
    %v1639 = vld [vmem:[#allocation13 + $0x100] sm:$0xff]
    %v1640 = vld [vmem:[#allocation13 + $0x108] sm:$0xff]
    %v1641 = vld [vmem:[#allocation13 + $0x110] sm:$0xff]
    %v1642 = vld [vmem:[#allocation13 + $0x118] sm:$0xff]
    %v1643 = vld [vmem:[#allocation13 + $0x120] sm:$0xff]
    %v1644 = vld [vmem:[#allocation13 + $0x128] sm:$0xff]
    %v1645 = vld [vmem:[#allocation13 + $0x130] sm:$0xff]
    %v1646 = vld [vmem:[#allocation13 + $0x138] sm:$0xff]
    %v1647 = vld [vmem:[#allocation13 + $0x140] sm:$0xff]
    %v1648 = vld [vmem:[#allocation13 + $0x148] sm:$0xff]
    %v1649 = vld [vmem:[#allocation13 + $0x150] sm:$0xff]
    %v1650 = vld [vmem:[#allocation13 + $0x158] sm:$0xff]
    %v1651 = vld [vmem:[#allocation13 + $0x160] sm:$0xff]
    %v1652 = vld [vmem:[#allocation13 + $0x168] sm:$0xff]
    %v1653 = vld [vmem:[#allocation13 + $0x170] sm:$0xff]
    %v1654 = vld [vmem:[#allocation13 + $0x178] sm:$0xff]
    %v1655 = vld [vmem:[#allocation13 + $0x180] sm:$0xff]
    %v1656 = vld [vmem:[#allocation13 + $0x188] sm:$0xff]
    %v1657 = vld [vmem:[#allocation13 + $0x190] sm:$0xff]
    %v1658 = vld [vmem:[#allocation13 + $0x198] sm:$0xff]
    %v1659 = vld [vmem:[#allocation13 + $0x1a0] sm:$0xff]
    %v1660 = vld [vmem:[#allocation13 + $0x1a8] sm:$0xff]
    %v1661 = vld [vmem:[#allocation13 + $0x1b0] sm:$0xff]
    %v1662 = vld [vmem:[#allocation13 + $0x1b8] sm:$0xff]
    %v1663 = vld [vmem:[#allocation13 + $0x1c0] sm:$0xff]
    %v1664 = vld [vmem:[#allocation13 + $0x1c8] sm:$0xff]
    %v1665 = vld [vmem:[#allocation13 + $0x1d0] sm:$0xff]
    %v1666 = vld [vmem:[#allocation13 + $0x1d8] sm:$0xff]
    %v1667 = vld [vmem:[#allocation13 + $0x1e0] sm:$0xff]
    %v1668 = vld [vmem:[#allocation13 + $0x1e8] sm:$0xff]
    %v1669 = vld [vmem:[#allocation13 + $0x1f0] sm:$0xff]
    %v1670 = vld [vmem:[#allocation13 + $0x1f8] sm:$0xff]
    %v1671 = vld [vmem:[%s9] sm:$0x3]
    %v1673 = vlaneseq
    %v1674 = vshrl.u32 %v1673, 7
    %v1675 = vsub.s32 0, %v1674
    %v1676 = vrot.slane %v1671, %v1675
    %v1677 = vlaneseq
    %v1678 = vshrl.u32 %v1677, 7
    %v1679 = vsub.s32 1, %v1678
    %v1680 = vrot.slane %v1671, %v1679
    %v1747 = vunpack.c.l.b16 %v1607
    %v1748 = vunpack.c.h.b16 %v1607
    %v1749 = vunpack.c.l.b16 %v1608
    %v1750 = vunpack.c.h.b16 %v1608
    %v1751 = vunpack.c.l.b16 %v1609
    %v1752 = vunpack.c.h.b16 %v1609
    %v1753 = vunpack.c.l.b16 %v1610
    %v1754 = vunpack.c.h.b16 %v1610
    %v1755 = vunpack.c.l.b16 %v1611
    %v1756 = vunpack.c.h.b16 %v1611
    %v1757 = vunpack.c.l.b16 %v1612
    %v1758 = vunpack.c.h.b16 %v1612
    %v1759 = vunpack.c.l.b16 %v1613
    %v1760 = vunpack.c.h.b16 %v1613
    %v1761 = vunpack.c.l.b16 %v1614
    %v1762 = vunpack.c.h.b16 %v1614
    %v1763 = vunpack.c.l.b16 %v1615
    %v1764 = vunpack.c.h.b16 %v1615
    %v1765 = vunpack.c.l.b16 %v1616
    %v1766 = vunpack.c.h.b16 %v1616
    %v1767 = vunpack.c.l.b16 %v1617
    %v1768 = vunpack.c.h.b16 %v1617
    %v1769 = vunpack.c.l.b16 %v1618
    %v1770 = vunpack.c.h.b16 %v1618
    %v1771 = vunpack.c.l.b16 %v1619
    %v1772 = vunpack.c.h.b16 %v1619
    %v1773 = vunpack.c.l.b16 %v1620
    %v1774 = vunpack.c.h.b16 %v1620
    %v1775 = vunpack.c.l.b16 %v1621
    %v1776 = vunpack.c.h.b16 %v1621
    %v1777 = vunpack.c.l.b16 %v1622
    %v1778 = vunpack.c.h.b16 %v1622
    %v1779 = vunpack.c.l.b16 %v1623
    %v1780 = vunpack.c.h.b16 %v1623
    %v1781 = vunpack.c.l.b16 %v1624
    %v1782 = vunpack.c.h.b16 %v1624
    %v1783 = vunpack.c.l.b16 %v1625
    %v1784 = vunpack.c.h.b16 %v1625
    %v1785 = vunpack.c.l.b16 %v1626
    %v1786 = vunpack.c.h.b16 %v1626
    %v1787 = vunpack.c.l.b16 %v1627
    %v1788 = vunpack.c.h.b16 %v1627
    %v1789 = vunpack.c.l.b16 %v1628
    %v1790 = vunpack.c.h.b16 %v1628
    %v1791 = vunpack.c.l.b16 %v1629
    %v1792 = vunpack.c.h.b16 %v1629
    %v1793 = vunpack.c.l.b16 %v1630
    %v1794 = vunpack.c.h.b16 %v1630
    %v1795 = vunpack.c.l.b16 %v1631
    %v1796 = vunpack.c.h.b16 %v1631
    %v1797 = vunpack.c.l.b16 %v1632
    %v1798 = vunpack.c.h.b16 %v1632
    %v1799 = vunpack.c.l.b16 %v1633
    %v1800 = vunpack.c.h.b16 %v1633
    %v1801 = vunpack.c.l.b16 %v1634
    %v1802 = vunpack.c.h.b16 %v1634
    %v1803 = vunpack.c.l.b16 %v1635
    %v1804 = vunpack.c.h.b16 %v1635
    %v1805 = vunpack.c.l.b16 %v1636
    %v1806 = vunpack.c.h.b16 %v1636
    %v1807 = vunpack.c.l.b16 %v1637
    %v1808 = vunpack.c.h.b16 %v1637
    %v1809 = vunpack.c.l.b16 %v1638
    %v1810 = vunpack.c.h.b16 %v1638
    %v1811 = vunpack.c.l.b16 %v1639
    %v1812 = vunpack.c.h.b16 %v1639
    %v1813 = vunpack.c.l.b16 %v1640
    %v1814 = vunpack.c.h.b16 %v1640
    %v1815 = vunpack.c.l.b16 %v1641
    %v1816 = vunpack.c.h.b16 %v1641
    %v1817 = vunpack.c.l.b16 %v1642
    %v1818 = vunpack.c.h.b16 %v1642
    %v1819 = vunpack.c.l.b16 %v1643
    %v1820 = vunpack.c.h.b16 %v1643
    %v1821 = vunpack.c.l.b16 %v1644
    %v1822 = vunpack.c.h.b16 %v1644
    %v1823 = vunpack.c.l.b16 %v1645
    %v1824 = vunpack.c.h.b16 %v1645
    %v1825 = vunpack.c.l.b16 %v1646
    %v1826 = vunpack.c.h.b16 %v1646
    %v1827 = vunpack.c.l.b16 %v1647
    %v1828 = vunpack.c.h.b16 %v1647
    %v1829 = vunpack.c.l.b16 %v1648
    %v1830 = vunpack.c.h.b16 %v1648
    %v1831 = vunpack.c.l.b16 %v1649
    %v1832 = vunpack.c.h.b16 %v1649
    %v1833 = vunpack.c.l.b16 %v1650
    %v1834 = vunpack.c.h.b16 %v1650
    %v1835 = vunpack.c.l.b16 %v1651
    %v1836 = vunpack.c.h.b16 %v1651
    %v1837 = vunpack.c.l.b16 %v1652
    %v1838 = vunpack.c.h.b16 %v1652
    %v1839 = vunpack.c.l.b16 %v1653
    %v1840 = vunpack.c.h.b16 %v1653
    %v1841 = vunpack.c.l.b16 %v1654
    %v1842 = vunpack.c.h.b16 %v1654
    %v1843 = vunpack.c.l.b16 %v1655
    %v1844 = vunpack.c.h.b16 %v1655
    %v1845 = vunpack.c.l.b16 %v1656
    %v1846 = vunpack.c.h.b16 %v1656
    %v1847 = vunpack.c.l.b16 %v1657
    %v1848 = vunpack.c.h.b16 %v1657
    %v1849 = vunpack.c.l.b16 %v1658
    %v1850 = vunpack.c.h.b16 %v1658
    %v1851 = vunpack.c.l.b16 %v1659
    %v1852 = vunpack.c.h.b16 %v1659
    %v1853 = vunpack.c.l.b16 %v1660
    %v1854 = vunpack.c.h.b16 %v1660
    %v1855 = vunpack.c.l.b16 %v1661
    %v1856 = vunpack.c.h.b16 %v1661
    %v1857 = vunpack.c.l.b16 %v1662
    %v1858 = vunpack.c.h.b16 %v1662
    %v1859 = vunpack.c.l.b16 %v1663
    %v1860 = vunpack.c.h.b16 %v1663
    %v1861 = vunpack.c.l.b16 %v1664
    %v1862 = vunpack.c.h.b16 %v1664
    %v1863 = vunpack.c.l.b16 %v1665
    %v1864 = vunpack.c.h.b16 %v1665
    %v1865 = vunpack.c.l.b16 %v1666
    %v1866 = vunpack.c.h.b16 %v1666
    %v1867 = vunpack.c.l.b16 %v1667
    %v1868 = vunpack.c.h.b16 %v1667
    %v1869 = vunpack.c.l.b16 %v1668
    %v1870 = vunpack.c.h.b16 %v1668
    %v1871 = vunpack.c.l.b16 %v1669
    %v1872 = vunpack.c.h.b16 %v1669
    %v1873 = vunpack.c.l.b16 %v1670
    %v1874 = vunpack.c.h.b16 %v1670
    %v1875 = vpack.c.b16 %v1749, %v1747
    %v1876 = vpack.c.b16 %v1750, %v1748
    %v1877 = vpack.c.b16 %v1753, %v1751
    %v1878 = vpack.c.b16 %v1754, %v1752
    %v1879 = vpack.c.b16 %v1757, %v1755
    %v1880 = vpack.c.b16 %v1758, %v1756
    %v1881 = vpack.c.b16 %v1761, %v1759
    %v1882 = vpack.c.b16 %v1762, %v1760
    %v1883 = vpack.c.b16 %v1765, %v1763
    %v1884 = vpack.c.b16 %v1766, %v1764
    %v1885 = vpack.c.b16 %v1769, %v1767
    %v1886 = vpack.c.b16 %v1770, %v1768
    %v1887 = vpack.c.b16 %v1773, %v1771
    %v1888 = vpack.c.b16 %v1774, %v1772
    %v1889 = vpack.c.b16 %v1777, %v1775
    %v1890 = vpack.c.b16 %v1778, %v1776
    %v1891 = vpack.c.b16 %v1781, %v1779
    %v1892 = vpack.c.b16 %v1782, %v1780
    %v1893 = vpack.c.b16 %v1785, %v1783
    %v1894 = vpack.c.b16 %v1786, %v1784
    %v1895 = vpack.c.b16 %v1789, %v1787
    %v1896 = vpack.c.b16 %v1790, %v1788
    %v1897 = vpack.c.b16 %v1793, %v1791
    %v1898 = vpack.c.b16 %v1794, %v1792
    %v1899 = vpack.c.b16 %v1797, %v1795
    %v1900 = vpack.c.b16 %v1798, %v1796
    %v1901 = vpack.c.b16 %v1801, %v1799
    %v1902 = vpack.c.b16 %v1802, %v1800
    %v1903 = vpack.c.b16 %v1805, %v1803
    %v1904 = vpack.c.b16 %v1806, %v1804
    %v1905 = vpack.c.b16 %v1809, %v1807
    %v1906 = vpack.c.b16 %v1810, %v1808
    %v1907 = vpack.c.b16 %v1813, %v1811
    %v1908 = vpack.c.b16 %v1814, %v1812
    %v1909 = vpack.c.b16 %v1817, %v1815
    %v1910 = vpack.c.b16 %v1818, %v1816
    %v1911 = vpack.c.b16 %v1821, %v1819
    %v1912 = vpack.c.b16 %v1822, %v1820
    %v1913 = vpack.c.b16 %v1825, %v1823
    %v1914 = vpack.c.b16 %v1826, %v1824
    %v1915 = vpack.c.b16 %v1829, %v1827
    %v1916 = vpack.c.b16 %v1830, %v1828
    %v1917 = vpack.c.b16 %v1833, %v1831
    %v1918 = vpack.c.b16 %v1834, %v1832
    %v1919 = vpack.c.b16 %v1837, %v1835
    %v1920 = vpack.c.b16 %v1838, %v1836
    %v1921 = vpack.c.b16 %v1841, %v1839
    %v1922 = vpack.c.b16 %v1842, %v1840
    %v1923 = vpack.c.b16 %v1845, %v1843
    %v1924 = vpack.c.b16 %v1846, %v1844
    %v1925 = vpack.c.b16 %v1849, %v1847
    %v1926 = vpack.c.b16 %v1850, %v1848
    %v1927 = vpack.c.b16 %v1853, %v1851
    %v1928 = vpack.c.b16 %v1854, %v1852
    %v1929 = vpack.c.b16 %v1857, %v1855
    %v1930 = vpack.c.b16 %v1858, %v1856
    %v1931 = vpack.c.b16 %v1861, %v1859
    %v1932 = vpack.c.b16 %v1862, %v1860
    %v1933 = vpack.c.b16 %v1865, %v1863
    %v1934 = vpack.c.b16 %v1866, %v1864
    %v1935 = vpack.c.b16 %v1869, %v1867
    %v1936 = vpack.c.b16 %v1870, %v1868
    %v1937 = vpack.c.b16 %v1873, %v1871
    %v1938 = vpack.c.b16 %v1874, %v1872
    %2003 = vmatprep.subr.bf16.mxu0 %v1876
    %2004 = vmatpush1.bf16.msra.mxu0 %v1875
    %2005 = vmatprep.subr.bf16.mxu0 %v1878
    %2006 = vmatpush1.bf16.msra.mxu0 %v1877
    %2007 = vmatprep.subr.bf16.mxu0 %v1880
    %2008 = vmatpush1.bf16.msra.mxu0 %v1879
    %2009 = vmatprep.subr.bf16.mxu0 %v1882
    %2010 = vmatpush1.bf16.msra.mxu0 %v1881
    %2011 = vmatprep.subr.bf16.mxu0 %v1884
    %2012 = vmatpush1.bf16.msra.mxu0 %v1883
    %2013 = vmatprep.subr.bf16.mxu0 %v1886
    %2014 = vmatpush1.bf16.msra.mxu0 %v1885
    %2015 = vmatprep.subr.bf16.mxu0 %v1888
    %2016 = vmatpush1.bf16.msra.mxu0 %v1887
    %2017 = vmatprep.subr.bf16.mxu0 %v1890
    %2018 = vmatpush1.bf16.msra.mxu0 %v1889
    %2019 = vmatprep.subr.bf16.mxu0 %v1892
    %2020 = vmatpush1.bf16.msra.mxu0 %v1891
    %2021 = vmatprep.subr.bf16.mxu0 %v1894
    %2022 = vmatpush1.bf16.msra.mxu0 %v1893
    %2023 = vmatprep.subr.bf16.mxu0 %v1896
    %2024 = vmatpush1.bf16.msra.mxu0 %v1895
    %2025 = vmatprep.subr.bf16.mxu0 %v1898
    %2026 = vmatpush1.bf16.msra.mxu0 %v1897
    %2027 = vmatprep.subr.bf16.mxu0 %v1900
    %2028 = vmatpush1.bf16.msra.mxu0 %v1899
    %2029 = vmatprep.subr.bf16.mxu0 %v1902
    %2030 = vmatpush1.bf16.msra.mxu0 %v1901
    %2031 = vmatprep.subr.bf16.mxu0 %v1904
    %2032 = vmatpush1.bf16.msra.mxu0 %v1903
    %2033 = vmatprep.subr.bf16.mxu0 %v1906
    %2034 = vmatpush1.bf16.msra.mxu0 %v1905
    %2035 = vmatprep.mubr.bf16.mxu0 %v1604
    %2036 = vmatmul.mubr.bf16.gmra.mrb[0].mxu0 %v1603
    %v2037 = vpop.f32.mrb[0].mxu0
    %v2038 = vadd.f32 %v1676, %v2037
    %v2039 = vpop.f32.mrb[0].mxu0
    %v2040 = vadd.f32 %v1680, %v2039
    %v2041 = vpop.f32.mrb[0].mxu0
    %v2042 = vpop.f32.mrb[0].mxu0
    %2043 = vdwg.mxu0
    %2044 = vmatprep.subr.bf16.mxu0 %v1908
    %2045 = vmatpush1.bf16.msra.mxu0 %v1907
    %2046 = vmatprep.subr.bf16.mxu0 %v1910
    %2047 = vmatpush1.bf16.msra.mxu0 %v1909
    %2048 = vmatprep.subr.bf16.mxu0 %v1912
    %2049 = vmatpush1.bf16.msra.mxu0 %v1911
    %2050 = vmatprep.subr.bf16.mxu0 %v1914
    %2051 = vmatpush1.bf16.msra.mxu0 %v1913
    %2052 = vmatprep.subr.bf16.mxu0 %v1916
    %2053 = vmatpush1.bf16.msra.mxu0 %v1915
    %2054 = vmatprep.subr.bf16.mxu0 %v1918
    %2055 = vmatpush1.bf16.msra.mxu0 %v1917
    %2056 = vmatprep.subr.bf16.mxu0 %v1920
    %2057 = vmatpush1.bf16.msra.mxu0 %v1919
    %2058 = vmatprep.subr.bf16.mxu0 %v1922
    %2059 = vmatpush1.bf16.msra.mxu0 %v1921
    %2060 = vmatprep.subr.bf16.mxu0 %v1924
    %2061 = vmatpush1.bf16.msra.mxu0 %v1923
    %2062 = vmatprep.subr.bf16.mxu0 %v1926
    %2063 = vmatpush1.bf16.msra.mxu0 %v1925
    %2064 = vmatprep.subr.bf16.mxu0 %v1928
    %2065 = vmatpush1.bf16.msra.mxu0 %v1927
    %2066 = vmatprep.subr.bf16.mxu0 %v1930
    %2067 = vmatpush1.bf16.msra.mxu0 %v1929
    %2068 = vmatprep.subr.bf16.mxu0 %v1932
    %2069 = vmatpush1.bf16.msra.mxu0 %v1931
    %2070 = vmatprep.subr.bf16.mxu0 %v1934
    %2071 = vmatpush1.bf16.msra.mxu0 %v1933
    %2072 = vmatprep.subr.bf16.mxu0 %v1936
    %2073 = vmatpush1.bf16.msra.mxu0 %v1935
    %2074 = vmatprep.subr.bf16.mxu0 %v1938
    %2075 = vmatpush1.bf16.msra.mxu0 %v1937
    %2076 = vmatprep.mubr.bf16.mxu0 %v1606
    %2077 = vmatmul.mubr.bf16.gmra.mrb[0].mxu0 %v1605
    %v2078 = vpop.f32.mrb[0].mxu0
    %v2079 = vadd.f32 %v2038, %v2078
    %v2080 = vpop.f32.mrb[0].mxu0
    %v2081 = vadd.f32 %v2040, %v2080
    %v2082 = vpop.f32.mrb[0].mxu0
    %v2083 = vpop.f32.mrb[0].mxu0
    %2084 = vdwg.mxu0
    %v2085 = vmul.f32 %v2081, 0.5
    %v2086 = vmul.f32 %v2085, 1.442695
    %v2087 = vpow.pop %v2086
    %v2088 = vmul.f32 %v2087, %v171
    %v2089 = vadd.f32 %v2088, %v2079
    %v2090 = vpack.c.bf16 %v2089, %v2089
    %v2091 = vld [vmem:[#allocation14] sm:$0xff]
    %v2092 = vld [vmem:[#allocation14 + $0x8] sm:$0xff]
    %v2093 = vld [vmem:[#allocation14 + $0x10] sm:$0xff]
    %v2094 = vld [vmem:[#allocation14 + $0x18] sm:$0xff]
    %v2095 = vld [vmem:[#allocation14 + $0x20] sm:$0xff]
    %v2096 = vld [vmem:[#allocation14 + $0x28] sm:$0xff]
    %v2097 = vld [vmem:[#allocation14 + $0x30] sm:$0xff]
    %v2098 = vld [vmem:[#allocation14 + $0x38] sm:$0xff]
    %v2099 = vld [vmem:[#allocation14 + $0x40] sm:$0xff]
    %v2100 = vld [vmem:[#allocation14 + $0x48] sm:$0xff]
    %v2101 = vld [vmem:[#allocation14 + $0x50] sm:$0xff]
    %v2102 = vld [vmem:[#allocation14 + $0x58] sm:$0xff]
    %v2103 = vld [vmem:[#allocation14 + $0x60] sm:$0xff]
    %v2104 = vld [vmem:[#allocation14 + $0x68] sm:$0xff]
    %v2105 = vld [vmem:[#allocation14 + $0x70] sm:$0xff]
    %v2106 = vld [vmem:[#allocation14 + $0x78] sm:$0xff]
    %v2107 = vld [vmem:[#allocation14 + $0x80] sm:$0xff]
    %v2108 = vld [vmem:[#allocation14 + $0x88] sm:$0xff]
    %v2109 = vld [vmem:[#allocation14 + $0x90] sm:$0xff]
    %v2110 = vld [vmem:[#allocation14 + $0x98] sm:$0xff]
    %v2111 = vld [vmem:[#allocation14 + $0xa0] sm:$0xff]
    %v2112 = vld [vmem:[#allocation14 + $0xa8] sm:$0xff]
    %v2113 = vld [vmem:[#allocation14 + $0xb0] sm:$0xff]
    %v2114 = vld [vmem:[#allocation14 + $0xb8] sm:$0xff]
    %v2115 = vld [vmem:[#allocation14 + $0xc0] sm:$0xff]
    %v2116 = vld [vmem:[#allocation14 + $0xc8] sm:$0xff]
    %v2117 = vld [vmem:[#allocation14 + $0xd0] sm:$0xff]
    %v2118 = vld [vmem:[#allocation14 + $0xd8] sm:$0xff]
    %v2119 = vld [vmem:[#allocation14 + $0xe0] sm:$0xff]
    %v2120 = vld [vmem:[#allocation14 + $0xe8] sm:$0xff]
    %v2121 = vld [vmem:[#allocation14 + $0xf0] sm:$0xff]
    %v2122 = vld [vmem:[#allocation14 + $0xf8] sm:$0xff]
    %v2123 = vld [vmem:[%s11] sm:$0xf]
    %v2125 = vlaneseq
    %v2126 = vshrl.u32 %v2125, 7
    %v2127 = vsub.s32 0, %v2126
    %v2128 = vrot.slane %v2123, %v2127
    %v2129 = vlaneseq
    %v2130 = vshrl.u32 %v2129, 7
    %v2131 = vsub.s32 1, %v2130
    %v2132 = vrot.slane %v2123, %v2131
    %v2133 = vlaneseq
    %v2134 = vshrl.u32 %v2133, 7
    %v2135 = vsub.s32 2, %v2134
    %v2136 = vrot.slane %v2123, %v2135
    %v2137 = vlaneseq
    %v2138 = vshrl.u32 %v2137, 7
    %v2139 = vsub.s32 3, %v2138
    %v2140 = vrot.slane %v2123, %v2139
    %v2177 = vunpack.c.l.b16 %v2091
    %v2178 = vunpack.c.h.b16 %v2091
    %v2179 = vunpack.c.l.b16 %v2092
    %v2180 = vunpack.c.h.b16 %v2092
    %v2181 = vunpack.c.l.b16 %v2093
    %v2182 = vunpack.c.h.b16 %v2093
    %v2183 = vunpack.c.l.b16 %v2094
    %v2184 = vunpack.c.h.b16 %v2094
    %v2185 = vunpack.c.l.b16 %v2095
    %v2186 = vunpack.c.h.b16 %v2095
    %v2187 = vunpack.c.l.b16 %v2096
    %v2188 = vunpack.c.h.b16 %v2096
    %v2189 = vunpack.c.l.b16 %v2097
    %v2190 = vunpack.c.h.b16 %v2097
    %v2191 = vunpack.c.l.b16 %v2098
    %v2192 = vunpack.c.h.b16 %v2098
    %v2193 = vunpack.c.l.b16 %v2099
    %v2194 = vunpack.c.h.b16 %v2099
    %v2195 = vunpack.c.l.b16 %v2100
    %v2196 = vunpack.c.h.b16 %v2100
    %v2197 = vunpack.c.l.b16 %v2101
    %v2198 = vunpack.c.h.b16 %v2101
    %v2199 = vunpack.c.l.b16 %v2102
    %v2200 = vunpack.c.h.b16 %v2102
    %v2201 = vunpack.c.l.b16 %v2103
    %v2202 = vunpack.c.h.b16 %v2103
    %v2203 = vunpack.c.l.b16 %v2104
    %v2204 = vunpack.c.h.b16 %v2104
    %v2205 = vunpack.c.l.b16 %v2105
    %v2206 = vunpack.c.h.b16 %v2105
    %v2207 = vunpack.c.l.b16 %v2106
    %v2208 = vunpack.c.h.b16 %v2106
    %v2209 = vunpack.c.l.b16 %v2107
    %v2210 = vunpack.c.h.b16 %v2107
    %v2211 = vunpack.c.l.b16 %v2108
    %v2212 = vunpack.c.h.b16 %v2108
    %v2213 = vunpack.c.l.b16 %v2109
    %v2214 = vunpack.c.h.b16 %v2109
    %v2215 = vunpack.c.l.b16 %v2110
    %v2216 = vunpack.c.h.b16 %v2110
    %v2217 = vunpack.c.l.b16 %v2111
    %v2218 = vunpack.c.h.b16 %v2111
    %v2219 = vunpack.c.l.b16 %v2112
    %v2220 = vunpack.c.h.b16 %v2112
    %v2221 = vunpack.c.l.b16 %v2113
    %v2222 = vunpack.c.h.b16 %v2113
    %v2223 = vunpack.c.l.b16 %v2114
    %v2224 = vunpack.c.h.b16 %v2114
    %v2225 = vunpack.c.l.b16 %v2115
    %v2226 = vunpack.c.h.b16 %v2115
    %v2227 = vunpack.c.l.b16 %v2116
    %v2228 = vunpack.c.h.b16 %v2116
    %v2229 = vunpack.c.l.b16 %v2117
    %v2230 = vunpack.c.h.b16 %v2117
    %v2231 = vunpack.c.l.b16 %v2118
    %v2232 = vunpack.c.h.b16 %v2118
    %v2233 = vunpack.c.l.b16 %v2119
    %v2234 = vunpack.c.h.b16 %v2119
    %v2235 = vunpack.c.l.b16 %v2120
    %v2236 = vunpack.c.h.b16 %v2120
    %v2237 = vunpack.c.l.b16 %v2121
    %v2238 = vunpack.c.h.b16 %v2121
    %v2239 = vunpack.c.l.b16 %v2122
    %v2240 = vunpack.c.h.b16 %v2122
    %v2241 = vpack.c.b16 %v2181, %v2177
    %v2242 = vpack.c.b16 %v2182, %v2178
    %v2243 = vpack.c.b16 %v2183, %v2179
    %v2244 = vpack.c.b16 %v2184, %v2180
    %v2245 = vpack.c.b16 %v2189, %v2185
    %v2246 = vpack.c.b16 %v2190, %v2186
    %v2247 = vpack.c.b16 %v2191, %v2187
    %v2248 = vpack.c.b16 %v2192, %v2188
    %v2249 = vpack.c.b16 %v2197, %v2193
    %v2250 = vpack.c.b16 %v2198, %v2194
    %v2251 = vpack.c.b16 %v2199, %v2195
    %v2252 = vpack.c.b16 %v2200, %v2196
    %v2253 = vpack.c.b16 %v2205, %v2201
    %v2254 = vpack.c.b16 %v2206, %v2202
    %v2255 = vpack.c.b16 %v2207, %v2203
    %v2256 = vpack.c.b16 %v2208, %v2204
    %v2257 = vpack.c.b16 %v2213, %v2209
    %v2258 = vpack.c.b16 %v2214, %v2210
    %v2259 = vpack.c.b16 %v2215, %v2211
    %v2260 = vpack.c.b16 %v2216, %v2212
    %v2261 = vpack.c.b16 %v2221, %v2217
    %v2262 = vpack.c.b16 %v2222, %v2218
    %v2263 = vpack.c.b16 %v2223, %v2219
    %v2264 = vpack.c.b16 %v2224, %v2220
    %v2265 = vpack.c.b16 %v2229, %v2225
    %v2266 = vpack.c.b16 %v2230, %v2226
    %v2267 = vpack.c.b16 %v2231, %v2227
    %v2268 = vpack.c.b16 %v2232, %v2228
    %v2269 = vpack.c.b16 %v2237, %v2233
    %v2270 = vpack.c.b16 %v2238, %v2234
    %v2271 = vpack.c.b16 %v2239, %v2235
    %v2272 = vpack.c.b16 %v2240, %v2236
    %2305 = vmatprep.subr.bf16.mxu0 %v2242
    %2306 = vmatpush1.bf16.msra.mxu0 %v2241
    %2307 = vmatprep.subr.bf16.mxu0 %v2246
    %2308 = vmatpush1.bf16.msra.mxu0 %v2245
    %2309 = vmatprep.subr.bf16.mxu0 %v2250
    %2310 = vmatpush1.bf16.msra.mxu0 %v2249
    %2311 = vmatprep.subr.bf16.mxu0 %v2254
    %2312 = vmatpush1.bf16.msra.mxu0 %v2253
    %2313 = vmatprep.subr.bf16.mxu0 %v2258
    %2314 = vmatpush1.bf16.msra.mxu0 %v2257
    %2315 = vmatprep.subr.bf16.mxu0 %v2262
    %2316 = vmatpush1.bf16.msra.mxu0 %v2261
    %2317 = vmatprep.subr.bf16.mxu0 %v2266
    %2318 = vmatpush1.bf16.msra.mxu0 %v2265
    %2319 = vmatprep.subr.bf16.mxu0 %v2270
    %2320 = vmatpush1.bf16.msra.mxu0 %v2269
    %2321 = vmatprep.subr.bf16.mxu0 0
    %2322 = vmatpush1.bf16.msra.mxu0 0
    %2323 = vmatprep.subr.bf16.mxu0 0
    %2324 = vmatpush1.bf16.msra.mxu0 0
    %2325 = vmatprep.subr.bf16.mxu0 0
    %2326 = vmatpush1.bf16.msra.mxu0 0
    %2327 = vmatprep.subr.bf16.mxu0 0
    %2328 = vmatpush1.bf16.msra.mxu0 0
    %2329 = vmatprep.subr.bf16.mxu0 0
    %2330 = vmatpush1.bf16.msra.mxu0 0
    %2331 = vmatprep.subr.bf16.mxu0 0
    %2332 = vmatpush1.bf16.msra.mxu0 0
    %2333 = vmatprep.subr.bf16.mxu0 0
    %2334 = vmatpush1.bf16.msra.mxu0 0
    %2335 = vmatprep.subr.bf16.mxu0 0
    %2336 = vmatpush1.bf16.msra.mxu0 0
    %2337 = vmatprep.mubr.bf16.mxu0 0
    %2338 = vmatmul.mubr.bf16.gmra.mrb[0].mxu0 %v2090
    %v2339 = vpop.f32.mrb[0].mxu0
    %v2340 = vadd.f32 %v2128, %v2339
    %v2341 = vpop.f32.mrb[0].mxu0
    %v2342 = vadd.f32 %v2132, %v2341
    %v2343 = vpop.f32.mrb[0].mxu0
    %v2344 = vpop.f32.mrb[0].mxu0
    %2345 = vdwg.mxu0
    %2346 = vmatprep.subr.bf16.mxu0 %v2244
    %2347 = vmatpush1.bf16.msra.mxu0 %v2243
    %2348 = vmatprep.subr.bf16.mxu0 %v2248
    %2349 = vmatpush1.bf16.msra.mxu0 %v2247
    %2350 = vmatprep.subr.bf16.mxu0 %v2252
    %2351 = vmatpush1.bf16.msra.mxu0 %v2251
    %2352 = vmatprep.subr.bf16.mxu0 %v2256
    %2353 = vmatpush1.bf16.msra.mxu0 %v2255
    %2354 = vmatprep.subr.bf16.mxu0 %v2260
    %2355 = vmatpush1.bf16.msra.mxu0 %v2259
    %2356 = vmatprep.subr.bf16.mxu0 %v2264
    %2357 = vmatpush1.bf16.msra.mxu0 %v2263
    %2358 = vmatprep.subr.bf16.mxu0 %v2268
    %2359 = vmatpush1.bf16.msra.mxu0 %v2267
    %2360 = vmatprep.subr.bf16.mxu0 %v2272
    %2361 = vmatpush1.bf16.msra.mxu0 %v2271
    %2362 = vmatprep.subr.bf16.mxu0 0
    %2363 = vmatpush1.bf16.msra.mxu0 0
    %2364 = vmatprep.subr.bf16.mxu0 0
    %2365 = vmatpush1.bf16.msra.mxu0 0
    %2366 = vmatprep.subr.bf16.mxu0 0
    %2367 = vmatpush1.bf16.msra.mxu0 0
    %2368 = vmatprep.subr.bf16.mxu0 0
    %2369 = vmatpush1.bf16.msra.mxu0 0
    %2370 = vmatprep.subr.bf16.mxu0 0
    %2371 = vmatpush1.bf16.msra.mxu0 0
    %2372 = vmatprep.subr.bf16.mxu0 0
    %2373 = vmatpush1.bf16.msra.mxu0 0
    %2374 = vmatprep.subr.bf16.mxu0 0
    %2375 = vmatpush1.bf16.msra.mxu0 0
    %2376 = vmatprep.subr.bf16.mxu0 0
    %2377 = vmatpush1.bf16.msra.mxu0 0
    %2378 = vmatprep.mubr.bf16.mxu0 0
    %2379 = vmatmul.mubr.bf16.gmra.mrb[0].mxu0 %v2090
    %v2380 = vpop.f32.mrb[0].mxu0
    %v2381 = vadd.f32 %v2136, %v2380
    %v2382 = vpop.f32.mrb[0].mxu0
    %v2383 = vadd.f32 %v2140, %v2382
    %v2384 = vpop.f32.mrb[0].mxu0
    %v2385 = vpop.f32.mrb[0].mxu0
    %2386 = vdwg.mxu0
    %v2387 = vmax.f32 %v2340, 0.0
    %v2388 = vmax.f32 %v2342, 0.0
    %v2389 = vmax.f32 %v2381, 0.0
    %v2390 = vmax.f32 %v2383, 0.0
    %v2391 = vpack.c.bf16 %v2387, %v2387
    %v2392 = vpack.c.bf16 %v2388, %v2388
    %v2393 = vpack.c.bf16 %v2389, %v2389
    %v2394 = vpack.c.bf16 %v2390, %v2390
    %v2395 = vpack.c.bf16 %v170, %v170
    %v2396 = vld [vmem:[#allocation11] sm:$0xff]
    %v2397 = vld [vmem:[#allocation11 + $0x8] sm:$0xff]
    %v2398 = vld [vmem:[#allocation11 + $0x10] sm:$0xff]
    %v2399 = vld [vmem:[#allocation11 + $0x18] sm:$0xff]
    %v2404 = vunpack.c.l.b16 %v2396
    %v2405 = vunpack.c.h.b16 %v2396
    %v2406 = vunpack.c.l.b16 %v2397
    %v2407 = vunpack.c.h.b16 %v2397
    %v2408 = vunpack.c.l.b16 %v2398
    %v2409 = vunpack.c.h.b16 %v2398
    %v2410 = vunpack.c.l.b16 %v2399
    %v2411 = vunpack.c.h.b16 %v2399
    %v2412 = vpack.c.b16 %v2408, %v2404
    %v2413 = vpack.c.b16 %v2409, %v2405
    %v2414 = vpack.c.b16 %v2410, %v2406
    %v2415 = vpack.c.b16 %v2411, %v2407
    %vm2420 = vcmask 130048
    %v2422 = vsel %vm2420, %v2395, 0
    %2424 = vmatprep.subr.bf16.mxu0 %v2413
    %2425 = vmatpush1.bf16.msra.mxu0 %v2412
    %2426 = vmatprep.subr.bf16.mxu0 0
    %2427 = vmatpush1.bf16.msra.mxu0 0
    %2428 = vmatprep.subr.bf16.mxu0 0
    %2429 = vmatpush1.bf16.msra.mxu0 0
    %2430 = vmatprep.subr.bf16.mxu0 0
    %2431 = vmatpush1.bf16.msra.mxu0 0
    %2432 = vmatprep.subr.bf16.mxu0 0
    %2433 = vmatpush1.bf16.msra.mxu0 0
    %2434 = vmatprep.subr.bf16.mxu0 0
    %2435 = vmatpush1.bf16.msra.mxu0 0
    %2436 = vmatprep.subr.bf16.mxu0 0
    %2437 = vmatpush1.bf16.msra.mxu0 0
    %2438 = vmatprep.subr.bf16.mxu0 0
    %2439 = vmatpush1.bf16.msra.mxu0 0
    %2440 = vmatprep.subr.bf16.mxu0 0
    %2441 = vmatpush1.bf16.msra.mxu0 0
    %2442 = vmatprep.subr.bf16.mxu0 0
    %2443 = vmatpush1.bf16.msra.mxu0 0
    %2444 = vmatprep.subr.bf16.mxu0 0
    %2445 = vmatpush1.bf16.msra.mxu0 0
    %2446 = vmatprep.subr.bf16.mxu0 0
    %2447 = vmatpush1.bf16.msra.mxu0 0
    %2448 = vmatprep.subr.bf16.mxu0 0
    %2449 = vmatpush1.bf16.msra.mxu0 0
    %2450 = vmatprep.subr.bf16.mxu0 0
    %2451 = vmatpush1.bf16.msra.mxu0 0
    %2452 = vmatprep.subr.bf16.mxu0 0
    %2453 = vmatpush1.bf16.msra.mxu0 0
    %2454 = vmatprep.subr.bf16.mxu0 0
    %2455 = vmatpush1.bf16.msra.mxu0 0
    %2456 = vmatprep.mubr.bf16.mxu0 0
    %2457 = vmatmul.mubr.bf16.gmra.mrb[0].mxu0 %v2422
    %v2458 = vpop.f32.mrb[0].mxu0
    %v2459 = vadd.f32 0.0, %v2458
    %v2460 = vpop.f32.mrb[0].mxu0
    %v2461 = vadd.f32 0.0, %v2460
    %v2462 = vpop.f32.mrb[0].mxu0
    %v2463 = vpop.f32.mrb[0].mxu0
    %2464 = vdwg.mxu0
    %2465 = vmatprep.subr.bf16.mxu0 %v2415
    %2466 = vmatpush1.bf16.msra.mxu0 %v2414
    %2467 = vmatprep.subr.bf16.mxu0 0
    %2468 = vmatpush1.bf16.msra.mxu0 0
    %2469 = vmatprep.subr.bf16.mxu0 0
    %2470 = vmatpush1.bf16.msra.mxu0 0
    %2471 = vmatprep.subr.bf16.mxu0 0
    %2472 = vmatpush1.bf16.msra.mxu0 0
    %2473 = vmatprep.subr.bf16.mxu0 0
    %2474 = vmatpush1.bf16.msra.mxu0 0
    %2475 = vmatprep.subr.bf16.mxu0 0
    %2476 = vmatpush1.bf16.msra.mxu0 0
    %2477 = vmatprep.subr.bf16.mxu0 0
    %2478 = vmatpush1.bf16.msra.mxu0 0
    %2479 = vmatprep.subr.bf16.mxu0 0
    %2480 = vmatpush1.bf16.msra.mxu0 0
    %2481 = vmatprep.subr.bf16.mxu0 0
    %2482 = vmatpush1.bf16.msra.mxu0 0
    %2483 = vmatprep.subr.bf16.mxu0 0
    %2484 = vmatpush1.bf16.msra.mxu0 0
    %2485 = vmatprep.subr.bf16.mxu0 0
    %2486 = vmatpush1.bf16.msra.mxu0 0
    %2487 = vmatprep.subr.bf16.mxu0 0
    %2488 = vmatpush1.bf16.msra.mxu0 0
    %2489 = vmatprep.subr.bf16.mxu0 0
    %2490 = vmatpush1.bf16.msra.mxu0 0
    %2491 = vmatprep.subr.bf16.mxu0 0
    %2492 = vmatpush1.bf16.msra.mxu0 0
    %2493 = vmatprep.subr.bf16.mxu0 0
    %2494 = vmatpush1.bf16.msra.mxu0 0
    %2495 = vmatprep.subr.bf16.mxu0 0
    %2496 = vmatpush1.bf16.msra.mxu0 0
    %2497 = vmatprep.mubr.bf16.mxu0 0
    %2498 = vmatmul.mubr.bf16.gmra.mrb[0].mxu0 %v2422
    %v2499 = vpop.f32.mrb[0].mxu0
    %v2500 = vadd.f32 0.0, %v2499
    %v2501 = vpop.f32.mrb[0].mxu0
    %v2502 = vadd.f32 0.0, %v2501
    %v2503 = vpop.f32.mrb[0].mxu0
    %v2504 = vpop.f32.mrb[0].mxu0
    %2505 = vdwg.mxu0
    %2506 = vmatprep.subr.bf16.mxu0 %v1012
    %2507 = vmatpush1.bf16.msra.mxu0 %v1011
    %2508 = vmatprep.subr.bf16.mxu0 %v1016
    %2509 = vmatpush1.bf16.msra.mxu0 %v1015
    %2510 = vmatprep.subr.bf16.mxu0 %v1020
    %2511 = vmatpush1.bf16.msra.mxu0 %v1019
    %2512 = vmatprep.subr.bf16.mxu0 %v1024
    %2513 = vmatpush1.bf16.msra.mxu0 %v1023
    %2514 = vmatprep.subr.bf16.mxu0 %v1028
    %2515 = vmatpush1.bf16.msra.mxu0 %v1027
    %2516 = vmatprep.subr.bf16.mxu0 %v1032
    %2517 = vmatpush1.bf16.msra.mxu0 %v1031
    %2518 = vmatprep.subr.bf16.mxu0 %v1036
    %2519 = vmatpush1.bf16.msra.mxu0 %v1035
    %2520 = vmatprep.subr.bf16.mxu0 %v1040
    %2521 = vmatpush1.bf16.msra.mxu0 %v1039
    %2522 = vmatprep.subr.bf16.mxu0 %v1044
    %2523 = vmatpush1.bf16.msra.mxu0 %v1043
    %2524 = vmatprep.subr.bf16.mxu0 %v1048
    %2525 = vmatpush1.bf16.msra.mxu0 %v1047
    %2526 = vmatprep.subr.bf16.mxu0 %v1052
    %2527 = vmatpush1.bf16.msra.mxu0 %v1051
    %2528 = vmatprep.subr.bf16.mxu0 %v1056
    %2529 = vmatpush1.bf16.msra.mxu0 %v1055
    %2530 = vmatprep.subr.bf16.mxu0 %v1060
    %2531 = vmatpush1.bf16.msra.mxu0 %v1059
    %2532 = vmatprep.subr.bf16.mxu0 %v1064
    %2533 = vmatpush1.bf16.msra.mxu0 %v1063
    %2534 = vmatprep.subr.bf16.mxu0 %v1068
    %2535 = vmatpush1.bf16.msra.mxu0 %v1067
    %2536 = vmatprep.subr.bf16.mxu0 %v1072
    %2537 = vmatpush1.bf16.msra.mxu0 %v1071
    %2538 = vmatprep.mubr.bf16.mxu0 %v2392
    %2539 = vmatmul.mubr.bf16.gmra.mrb[0].mxu0 %v2391
    %v2540 = vpop.f32.mrb[0].mxu0
    %v2541 = vadd.f32 %v2459, %v2540
    %v2542 = vpop.f32.mrb[0].mxu0
    %v2543 = vadd.f32 %v2461, %v2542
    %v2544 = vpop.f32.mrb[0].mxu0
    %v2545 = vpop.f32.mrb[0].mxu0
    %2546 = vdwg.mxu0
    %2547 = vmatprep.subr.bf16.mxu0 %v1076
    %2548 = vmatpush1.bf16.msra.mxu0 %v1075
    %2549 = vmatprep.subr.bf16.mxu0 %v1080
    %2550 = vmatpush1.bf16.msra.mxu0 %v1079
    %2551 = vmatprep.subr.bf16.mxu0 %v1084
    %2552 = vmatpush1.bf16.msra.mxu0 %v1083
    %2553 = vmatprep.subr.bf16.mxu0 %v1088
    %2554 = vmatpush1.bf16.msra.mxu0 %v1087
    %2555 = vmatprep.subr.bf16.mxu0 %v1092
    %2556 = vmatpush1.bf16.msra.mxu0 %v1091
    %2557 = vmatprep.subr.bf16.mxu0 %v1096
    %2558 = vmatpush1.bf16.msra.mxu0 %v1095
    %2559 = vmatprep.subr.bf16.mxu0 %v1100
    %2560 = vmatpush1.bf16.msra.mxu0 %v1099
    %2561 = vmatprep.subr.bf16.mxu0 %v1104
    %2562 = vmatpush1.bf16.msra.mxu0 %v1103
    %2563 = vmatprep.subr.bf16.mxu0 %v1108
    %2564 = vmatpush1.bf16.msra.mxu0 %v1107
    %2565 = vmatprep.subr.bf16.mxu0 %v1112
    %2566 = vmatpush1.bf16.msra.mxu0 %v1111
    %2567 = vmatprep.subr.bf16.mxu0 %v1116
    %2568 = vmatpush1.bf16.msra.mxu0 %v1115
    %2569 = vmatprep.subr.bf16.mxu0 %v1120
    %2570 = vmatpush1.bf16.msra.mxu0 %v1119
    %2571 = vmatprep.subr.bf16.mxu0 %v1124
    %2572 = vmatpush1.bf16.msra.mxu0 %v1123
    %2573 = vmatprep.subr.bf16.mxu0 %v1128
    %2574 = vmatpush1.bf16.msra.mxu0 %v1127
    %2575 = vmatprep.subr.bf16.mxu0 %v1132
    %2576 = vmatpush1.bf16.msra.mxu0 %v1131
    %2577 = vmatprep.subr.bf16.mxu0 %v1136
    %2578 = vmatpush1.bf16.msra.mxu0 %v1135
    %2579 = vmatprep.mubr.bf16.mxu0 %v2394
    %2580 = vmatmul.mubr.bf16.gmra.mrb[0].mxu0 %v2393
    %v2581 = vpop.f32.mrb[0].mxu0
    %v2582 = vadd.f32 %v2541, %v2581
    %v2583 = vpop.f32.mrb[0].mxu0
    %v2584 = vadd.f32 %v2543, %v2583
    %v2585 = vpop.f32.mrb[0].mxu0
    %v2586 = vpop.f32.mrb[0].mxu0
    %2587 = vdwg.mxu0
    %2588 = vmatprep.subr.bf16.mxu0 %v1014
    %2589 = vmatpush1.bf16.msra.mxu0 %v1013
    %2590 = vmatprep.subr.bf16.mxu0 %v1018
    %2591 = vmatpush1.bf16.msra.mxu0 %v1017
    %2592 = vmatprep.subr.bf16.mxu0 %v1022
    %2593 = vmatpush1.bf16.msra.mxu0 %v1021
    %2594 = vmatprep.subr.bf16.mxu0 %v1026
    %2595 = vmatpush1.bf16.msra.mxu0 %v1025
    %2596 = vmatprep.subr.bf16.mxu0 %v1030
    %2597 = vmatpush1.bf16.msra.mxu0 %v1029
    %2598 = vmatprep.subr.bf16.mxu0 %v1034
    %2599 = vmatpush1.bf16.msra.mxu0 %v1033
    %2600 = vmatprep.subr.bf16.mxu0 %v1038
    %2601 = vmatpush1.bf16.msra.mxu0 %v1037
    %2602 = vmatprep.subr.bf16.mxu0 %v1042
    %2603 = vmatpush1.bf16.msra.mxu0 %v1041
    %2604 = vmatprep.subr.bf16.mxu0 %v1046
    %2605 = vmatpush1.bf16.msra.mxu0 %v1045
    %2606 = vmatprep.subr.bf16.mxu0 %v1050
    %2607 = vmatpush1.bf16.msra.mxu0 %v1049
    %2608 = vmatprep.subr.bf16.mxu0 %v1054
    %2609 = vmatpush1.bf16.msra.mxu0 %v1053
    %2610 = vmatprep.subr.bf16.mxu0 %v1058
    %2611 = vmatpush1.bf16.msra.mxu0 %v1057
    %2612 = vmatprep.subr.bf16.mxu0 %v1062
    %2613 = vmatpush1.bf16.msra.mxu0 %v1061
    %2614 = vmatprep.subr.bf16.mxu0 %v1066
    %2615 = vmatpush1.bf16.msra.mxu0 %v1065
    %2616 = vmatprep.subr.bf16.mxu0 %v1070
    %2617 = vmatpush1.bf16.msra.mxu0 %v1069
    %2618 = vmatprep.subr.bf16.mxu0 %v1074
    %2619 = vmatpush1.bf16.msra.mxu0 %v1073
    %2620 = vmatprep.mubr.bf16.mxu0 %v2392
    %2621 = vmatmul.mubr.bf16.gmra.mrb[0].mxu0 %v2391
    %v2622 = vpop.f32.mrb[0].mxu0
    %v2623 = vadd.f32 %v2500, %v2622
    %v2624 = vpop.f32.mrb[0].mxu0
    %v2625 = vadd.f32 %v2502, %v2624
    %v2626 = vpop.f32.mrb[0].mxu0
    %v2627 = vpop.f32.mrb[0].mxu0
    %2628 = vdwg.mxu0
    %2629 = vmatprep.subr.bf16.mxu0 %v1078
    %2630 = vmatpush1.bf16.msra.mxu0 %v1077
    %2631 = vmatprep.subr.bf16.mxu0 %v1082
    %2632 = vmatpush1.bf16.msra.mxu0 %v1081
    %2633 = vmatprep.subr.bf16.mxu0 %v1086
    %2634 = vmatpush1.bf16.msra.mxu0 %v1085
    %2635 = vmatprep.subr.bf16.mxu0 %v1090
    %2636 = vmatpush1.bf16.msra.mxu0 %v1089
    %2637 = vmatprep.subr.bf16.mxu0 %v1094
    %2638 = vmatpush1.bf16.msra.mxu0 %v1093
    %2639 = vmatprep.subr.bf16.mxu0 %v1098
    %2640 = vmatpush1.bf16.msra.mxu0 %v1097
    %2641 = vmatprep.subr.bf16.mxu0 %v1102
    %2642 = vmatpush1.bf16.msra.mxu0 %v1101
    %2643 = vmatprep.subr.bf16.mxu0 %v1106
    %2644 = vmatpush1.bf16.msra.mxu0 %v1105
    %2645 = vmatprep.subr.bf16.mxu0 %v1110
    %2646 = vmatpush1.bf16.msra.mxu0 %v1109
    %2647 = vmatprep.subr.bf16.mxu0 %v1114
    %2648 = vmatpush1.bf16.msra.mxu0 %v1113
    %2649 = vmatprep.subr.bf16.mxu0 %v1118
    %2650 = vmatpush1.bf16.msra.mxu0 %v1117
    %2651 = vmatprep.subr.bf16.mxu0 %v1122
    %2652 = vmatpush1.bf16.msra.mxu0 %v1121
    %2653 = vmatprep.subr.bf16.mxu0 %v1126
    %2654 = vmatpush1.bf16.msra.mxu0 %v1125
    %2655 = vmatprep.subr.bf16.mxu0 %v1130
    %2656 = vmatpush1.bf16.msra.mxu0 %v1129
    %2657 = vmatprep.subr.bf16.mxu0 %v1134
    %2658 = vmatpush1.bf16.msra.mxu0 %v1133
    %2659 = vmatprep.subr.bf16.mxu0 %v1138
    %2660 = vmatpush1.bf16.msra.mxu0 %v1137
    %2661 = vmatprep.mubr.bf16.mxu0 %v2394
    %2662 = vmatmul.mubr.bf16.gmra.mrb[0].mxu0 %v2393
    %v2663 = vpop.f32.mrb[0].mxu0
    %v2664 = vadd.f32 %v2623, %v2663
    %v2665 = vpop.f32.mrb[0].mxu0
    %v2666 = vadd.f32 %v2625, %v2665
    %v2667 = vpop.f32.mrb[0].mxu0
    %v2668 = vpop.f32.mrb[0].mxu0
    %2669 = vdwg.mxu0
    %v2670 = vadd.f32 %v2582, %v610
    %v2671 = vadd.f32 %v2584, %v614
    %v2672 = vadd.f32 %v2664, %v618
    %v2673 = vadd.f32 %v2666, %v622
    %v2674 = vmax.f32 %v2670, 0.0
    %v2675 = vmax.f32 %v2671, 0.0
    %v2676 = vmax.f32 %v2672, 0.0
    %v2677 = vmax.f32 %v2673, 0.0
    %v2678 = vpack.c.bf16 %v2674, %v2674
    %v2679 = vpack.c.bf16 %v2675, %v2675
    %v2680 = vpack.c.bf16 %v2676, %v2676
    %v2681 = vpack.c.bf16 %v2677, %v2677
    %v2682 = vld [vmem:[#allocation16] sm:$0xf]
    %v2683 = vld [vmem:[#allocation16 + $0x4] sm:$0xf]
    %v2684 = vld [vmem:[#allocation16 + $0x8] sm:$0xf]
    %v2685 = vld [vmem:[#allocation16 + $0xc] sm:$0xf]
    %v2686 = vld [vmem:[#allocation16 + $0x10] sm:$0xf]
    %v2687 = vld [vmem:[#allocation16 + $0x14] sm:$0xf]
    %v2688 = vld [vmem:[#allocation16 + $0x18] sm:$0xf]
    %v2689 = vld [vmem:[#allocation16 + $0x1c] sm:$0xf]
    %v2690 = vld [vmem:[#allocation16 + $0x20] sm:$0xf]
    %v2691 = vld [vmem:[#allocation16 + $0x24] sm:$0xf]
    %v2692 = vld [vmem:[#allocation16 + $0x28] sm:$0xf]
    %v2693 = vld [vmem:[#allocation16 + $0x2c] sm:$0xf]
    %v2694 = vld [vmem:[#allocation16 + $0x30] sm:$0xf]
    %v2695 = vld [vmem:[#allocation16 + $0x34] sm:$0xf]
    %v2696 = vld [vmem:[#allocation16 + $0x38] sm:$0xf]
    %v2697 = vld [vmem:[#allocation16 + $0x3c] sm:$0xf]
    %v2698 = vld [vmem:[#allocation16 + $0x40] sm:$0xf]
    %v2699 = vld [vmem:[#allocation16 + $0x44] sm:$0xf]
    %v2700 = vld [vmem:[#allocation16 + $0x48] sm:$0xf]
    %v2701 = vld [vmem:[#allocation16 + $0x4c] sm:$0xf]
    %v2702 = vld [vmem:[#allocation16 + $0x50] sm:$0xf]
    %v2703 = vld [vmem:[#allocation16 + $0x54] sm:$0xf]
    %v2704 = vld [vmem:[#allocation16 + $0x58] sm:$0xf]
    %v2705 = vld [vmem:[#allocation16 + $0x5c] sm:$0xf]
    %v2706 = vld [vmem:[#allocation16 + $0x60] sm:$0xf]
    %v2707 = vld [vmem:[#allocation16 + $0x64] sm:$0xf]
    %v2708 = vld [vmem:[#allocation16 + $0x68] sm:$0xf]
    %v2709 = vld [vmem:[#allocation16 + $0x6c] sm:$0xf]
    %v2710 = vld [vmem:[#allocation16 + $0x70] sm:$0xf]
    %v2711 = vld [vmem:[#allocation16 + $0x74] sm:$0xf]
    %v2712 = vld [vmem:[#allocation16 + $0x78] sm:$0xf]
    %v2713 = vld [vmem:[#allocation16 + $0x7c] sm:$0xf]
    %v2714 = vld [vmem:[#allocation16 + $0x80] sm:$0xf]
    %v2715 = vld [vmem:[#allocation16 + $0x84] sm:$0xf]
    %v2716 = vld [vmem:[#allocation16 + $0x88] sm:$0xf]
    %v2717 = vld [vmem:[#allocation16 + $0x8c] sm:$0xf]
    %v2718 = vld [vmem:[#allocation16 + $0x90] sm:$0xf]
    %v2719 = vld [vmem:[#allocation16 + $0x94] sm:$0xf]
    %v2720 = vld [vmem:[#allocation16 + $0x98] sm:$0xf]
    %v2721 = vld [vmem:[#allocation16 + $0x9c] sm:$0xf]
    %v2722 = vld [vmem:[#allocation16 + $0xa0] sm:$0xf]
    %v2723 = vld [vmem:[#allocation16 + $0xa4] sm:$0xf]
    %v2724 = vld [vmem:[#allocation16 + $0xa8] sm:$0xf]
    %v2725 = vld [vmem:[#allocation16 + $0xac] sm:$0xf]
    %v2726 = vld [vmem:[#allocation16 + $0xb0] sm:$0xf]
    %v2727 = vld [vmem:[#allocation16 + $0xb4] sm:$0xf]
    %v2728 = vld [vmem:[#allocation16 + $0xb8] sm:$0xf]
    %v2729 = vld [vmem:[#allocation16 + $0xbc] sm:$0xf]
    %v2730 = vld [vmem:[#allocation16 + $0xc0] sm:$0xf]
    %v2731 = vld [vmem:[#allocation16 + $0xc4] sm:$0xf]
    %v2732 = vld [vmem:[#allocation16 + $0xc8] sm:$0xf]
    %v2733 = vld [vmem:[#allocation16 + $0xcc] sm:$0xf]
    %v2734 = vld [vmem:[#allocation16 + $0xd0] sm:$0xf]
    %v2735 = vld [vmem:[#allocation16 + $0xd4] sm:$0xf]
    %v2736 = vld [vmem:[#allocation16 + $0xd8] sm:$0xf]
    %v2737 = vld [vmem:[#allocation16 + $0xdc] sm:$0xf]
    %v2738 = vld [vmem:[#allocation16 + $0xe0] sm:$0xf]
    %v2739 = vld [vmem:[#allocation16 + $0xe4] sm:$0xf]
    %v2740 = vld [vmem:[#allocation16 + $0xe8] sm:$0xf]
    %v2741 = vld [vmem:[#allocation16 + $0xec] sm:$0xf]
    %v2742 = vld [vmem:[#allocation16 + $0xf0] sm:$0xf]
    %v2743 = vld [vmem:[#allocation16 + $0xf4] sm:$0xf]
    %v2744 = vld [vmem:[#allocation16 + $0xf8] sm:$0xf]
    %v2745 = vld [vmem:[#allocation16 + $0xfc] sm:$0xf]
    %v2746 = vld [vmem:[%s13] sm:$0x1]
    %v2748 = vlaneseq
    %v2749 = vshrl.u32 %v2748, 7
    %v2750 = vsub.s32 0, %v2749
    %v2751 = vrot.slane %v2746, %v2750
    %v2817 = vunpack.c.l.b16 %v2682
    %v2818 = vunpack.c.l.b16 %v2683
    %v2819 = vunpack.c.l.b16 %v2684
    %v2820 = vunpack.c.l.b16 %v2685
    %v2821 = vunpack.c.l.b16 %v2686
    %v2822 = vunpack.c.l.b16 %v2687
    %v2823 = vunpack.c.l.b16 %v2688
    %v2824 = vunpack.c.l.b16 %v2689
    %v2825 = vunpack.c.l.b16 %v2690
    %v2826 = vunpack.c.l.b16 %v2691
    %v2827 = vunpack.c.l.b16 %v2692
    %v2828 = vunpack.c.l.b16 %v2693
    %v2829 = vunpack.c.l.b16 %v2694
    %v2830 = vunpack.c.l.b16 %v2695
    %v2831 = vunpack.c.l.b16 %v2696
    %v2832 = vunpack.c.l.b16 %v2697
    %v2833 = vunpack.c.l.b16 %v2698
    %v2834 = vunpack.c.l.b16 %v2699
    %v2835 = vunpack.c.l.b16 %v2700
    %v2836 = vunpack.c.l.b16 %v2701
    %v2837 = vunpack.c.l.b16 %v2702
    %v2838 = vunpack.c.l.b16 %v2703
    %v2839 = vunpack.c.l.b16 %v2704
    %v2840 = vunpack.c.l.b16 %v2705
    %v2841 = vunpack.c.l.b16 %v2706
    %v2842 = vunpack.c.l.b16 %v2707
    %v2843 = vunpack.c.l.b16 %v2708
    %v2844 = vunpack.c.l.b16 %v2709
    %v2845 = vunpack.c.l.b16 %v2710
    %v2846 = vunpack.c.l.b16 %v2711
    %v2847 = vunpack.c.l.b16 %v2712
    %v2848 = vunpack.c.l.b16 %v2713
    %v2849 = vunpack.c.l.b16 %v2714
    %v2850 = vunpack.c.l.b16 %v2715
    %v2851 = vunpack.c.l.b16 %v2716
    %v2852 = vunpack.c.l.b16 %v2717
    %v2853 = vunpack.c.l.b16 %v2718
    %v2854 = vunpack.c.l.b16 %v2719
    %v2855 = vunpack.c.l.b16 %v2720
    %v2856 = vunpack.c.l.b16 %v2721
    %v2857 = vunpack.c.l.b16 %v2722
    %v2858 = vunpack.c.l.b16 %v2723
    %v2859 = vunpack.c.l.b16 %v2724
    %v2860 = vunpack.c.l.b16 %v2725
    %v2861 = vunpack.c.l.b16 %v2726
    %v2862 = vunpack.c.l.b16 %v2727
    %v2863 = vunpack.c.l.b16 %v2728
    %v2864 = vunpack.c.l.b16 %v2729
    %v2865 = vunpack.c.l.b16 %v2730
    %v2866 = vunpack.c.l.b16 %v2731
    %v2867 = vunpack.c.l.b16 %v2732
    %v2868 = vunpack.c.l.b16 %v2733
    %v2869 = vunpack.c.l.b16 %v2734
    %v2870 = vunpack.c.l.b16 %v2735
    %v2871 = vunpack.c.l.b16 %v2736
    %v2872 = vunpack.c.l.b16 %v2737
    %v2873 = vunpack.c.l.b16 %v2738
    %v2874 = vunpack.c.l.b16 %v2739
    %v2875 = vunpack.c.l.b16 %v2740
    %v2876 = vunpack.c.l.b16 %v2741
    %v2877 = vunpack.c.l.b16 %v2742
    %v2878 = vunpack.c.l.b16 %v2743
    %v2879 = vunpack.c.l.b16 %v2744
    %v2880 = vunpack.c.l.b16 %v2745
    %v2881 = vpack.c.b16 %v2818, %v2817
    %v2882 = vpack.c.b16 %v2820, %v2819
    %v2883 = vpack.c.b16 %v2822, %v2821
    %v2884 = vpack.c.b16 %v2824, %v2823
    %v2885 = vpack.c.b16 %v2826, %v2825
    %v2886 = vpack.c.b16 %v2828, %v2827
    %v2887 = vpack.c.b16 %v2830, %v2829
    %v2888 = vpack.c.b16 %v2832, %v2831
    %v2889 = vpack.c.b16 %v2834, %v2833
    %v2890 = vpack.c.b16 %v2836, %v2835
    %v2891 = vpack.c.b16 %v2838, %v2837
    %v2892 = vpack.c.b16 %v2840, %v2839
    %v2893 = vpack.c.b16 %v2842, %v2841
    %v2894 = vpack.c.b16 %v2844, %v2843
    %v2895 = vpack.c.b16 %v2846, %v2845
    %v2896 = vpack.c.b16 %v2848, %v2847
    %v2897 = vpack.c.b16 %v2850, %v2849
    %v2898 = vpack.c.b16 %v2852, %v2851
    %v2899 = vpack.c.b16 %v2854, %v2853
    %v2900 = vpack.c.b16 %v2856, %v2855
    %v2901 = vpack.c.b16 %v2858, %v2857
    %v2902 = vpack.c.b16 %v2860, %v2859
    %v2903 = vpack.c.b16 %v2862, %v2861
    %v2904 = vpack.c.b16 %v2864, %v2863
    %v2905 = vpack.c.b16 %v2866, %v2865
    %v2906 = vpack.c.b16 %v2868, %v2867
    %v2907 = vpack.c.b16 %v2870, %v2869
    %v2908 = vpack.c.b16 %v2872, %v2871
    %v2909 = vpack.c.b16 %v2874, %v2873
    %v2910 = vpack.c.b16 %v2876, %v2875
    %v2911 = vpack.c.b16 %v2878, %v2877
    %v2912 = vpack.c.b16 %v2880, %v2879
    %2945 = vmatprep.subr.bf16.mxu0 0
    %2946 = vmatpush1.bf16.msra.mxu0 %v2881
    %2947 = vmatprep.subr.bf16.mxu0 0
    %2948 = vmatpush1.bf16.msra.mxu0 %v2882
    %2949 = vmatprep.subr.bf16.mxu0 0
    %2950 = vmatpush1.bf16.msra.mxu0 %v2883
    %2951 = vmatprep.subr.bf16.mxu0 0
    %2952 = vmatpush1.bf16.msra.mxu0 %v2884
    %2953 = vmatprep.subr.bf16.mxu0 0
    %2954 = vmatpush1.bf16.msra.mxu0 %v2885
    %2955 = vmatprep.subr.bf16.mxu0 0
    %2956 = vmatpush1.bf16.msra.mxu0 %v2886
    %2957 = vmatprep.subr.bf16.mxu0 0
    %2958 = vmatpush1.bf16.msra.mxu0 %v2887
    %2959 = vmatprep.subr.bf16.mxu0 0
    %2960 = vmatpush1.bf16.msra.mxu0 %v2888
    %2961 = vmatprep.subr.bf16.mxu0 0
    %2962 = vmatpush1.bf16.msra.mxu0 %v2889
    %2963 = vmatprep.subr.bf16.mxu0 0
    %2964 = vmatpush1.bf16.msra.mxu0 %v2890
    %2965 = vmatprep.subr.bf16.mxu0 0
    %2966 = vmatpush1.bf16.msra.mxu0 %v2891
    %2967 = vmatprep.subr.bf16.mxu0 0
    %2968 = vmatpush1.bf16.msra.mxu0 %v2892
    %2969 = vmatprep.subr.bf16.mxu0 0
    %2970 = vmatpush1.bf16.msra.mxu0 %v2893
    %2971 = vmatprep.subr.bf16.mxu0 0
    %2972 = vmatpush1.bf16.msra.mxu0 %v2894
    %2973 = vmatprep.subr.bf16.mxu0 0
    %2974 = vmatpush1.bf16.msra.mxu0 %v2895
    %2975 = vmatprep.subr.bf16.mxu0 0
    %2976 = vmatpush1.bf16.msra.mxu0 %v2896
    %2977 = vmatprep.mubr.bf16.mxu0 %v2679
    %2978 = vmatmul.mubr.bf16.gmra.mrb[0].mxu0 %v2678
    %v2979 = vpop.f32.mrb[0].mxu0
    %v2980 = vadd.f32 %v2751, %v2979
    %v2981 = vpop.f32.mrb[0].mxu0
    %v2982 = vpop.f32.mrb[0].mxu0
    %v2983 = vpop.f32.mrb[0].mxu0
    %2984 = vdwg.mxu0
    %2985 = vmatprep.subr.bf16.mxu0 0
    %2986 = vmatpush1.bf16.msra.mxu0 %v2897
    %2987 = vmatprep.subr.bf16.mxu0 0
    %2988 = vmatpush1.bf16.msra.mxu0 %v2898
    %2989 = vmatprep.subr.bf16.mxu0 0
    %2990 = vmatpush1.bf16.msra.mxu0 %v2899
    %2991 = vmatprep.subr.bf16.mxu0 0
    %2992 = vmatpush1.bf16.msra.mxu0 %v2900
    %2993 = vmatprep.subr.bf16.mxu0 0
    %2994 = vmatpush1.bf16.msra.mxu0 %v2901
    %2995 = vmatprep.subr.bf16.mxu0 0
    %2996 = vmatpush1.bf16.msra.mxu0 %v2902
    %2997 = vmatprep.subr.bf16.mxu0 0
    %2998 = vmatpush1.bf16.msra.mxu0 %v2903
    %2999 = vmatprep.subr.bf16.mxu0 0
    %3000 = vmatpush1.bf16.msra.mxu0 %v2904
    %3001 = vmatprep.subr.bf16.mxu0 0
    %3002 = vmatpush1.bf16.msra.mxu0 %v2905
    %3003 = vmatprep.subr.bf16.mxu0 0
    %3004 = vmatpush1.bf16.msra.mxu0 %v2906
    %3005 = vmatprep.subr.bf16.mxu0 0
    %3006 = vmatpush1.bf16.msra.mxu0 %v2907
    %3007 = vmatprep.subr.bf16.mxu0 0
    %3008 = vmatpush1.bf16.msra.mxu0 %v2908
    %3009 = vmatprep.subr.bf16.mxu0 0
    %3010 = vmatpush1.bf16.msra.mxu0 %v2909
    %3011 = vmatprep.subr.bf16.mxu0 0
    %3012 = vmatpush1.bf16.msra.mxu0 %v2910
    %3013 = vmatprep.subr.bf16.mxu0 0
    %3014 = vmatpush1.bf16.msra.mxu0 %v2911
    %3015 = vmatprep.subr.bf16.mxu0 0
    %3016 = vmatpush1.bf16.msra.mxu0 %v2912
    %3017 = vmatprep.mubr.bf16.mxu0 %v2681
    %3018 = vmatmul.mubr.bf16.gmra.mrb[0].mxu0 %v2680
    %v3019 = vpop.f32.mrb[0].mxu0
    %v3020 = vadd.f32 %v2980, %v3019
    %v3021 = vpop.f32.mrb[0].mxu0
    %v3022 = vpop.f32.mrb[0].mxu0
    %v3023 = vpop.f32.mrb[0].mxu0
    %3024 = vdwg.mxu0
    %v3025 = vsub.f32 0.0, %v3020
    %v3026 = vmul.f32 %v3025, 1.442695
    %v3027 = vpow.pop %v3026
    %v3028 = vadd.f32 %v3027, 1.0
    %v3029 = vrcp.pop %v3028
    %3030 = vst [vmem:[#allocation17] sm:$0xff] %v3029
    %3031 = vst [vmem:[#allocation18] sm:$0xff] %v2079
    %3032 = vst [vmem:[#allocation20] sm:$0xff] %v2081
    // Predicated region
    $region94: #{tpu_custom_call.1} parent=1 // pred_check
      _
    $region95: #{tpu_custom_call.1} parent=1 // pred_check_branch
      %3034 = sbr.rel (0) target = $region97
    $region96: #{tpu_custom_call.1} parent=1 // pred_region
      %s3036 = ssub.s32 128, 128
      %3037 = vsyncadd [#allocation4], %s3036
      %s3039 = sshll.u32 [#allocation17], 4
      %s3040 = int_to_ptr.vmem [resolvable:$true] %s3039
      %3042 = dma.vmem_to_hbm [thread:$0]  %s3040, 128, %s14, [#allocation4]
    $region97: #{tpu_custom_call.1} parent=1 // pred_fallthru
      _
    // Predicated region
    $region98: #{tpu_custom_call.1} parent=1 // pred_check
      _
    $region99: #{tpu_custom_call.1} parent=1 // pred_check_branch
      %3044 = sbr.rel (0) target = $region101
    $region100: #{tpu_custom_call.1} parent=1 // pred_region
      %s3046 = ssub.s32 128, 128
      %3047 = vsyncadd [#allocation19], %s3046
      %s3049 = sshll.u32 [#allocation18], 4
      %s3050 = int_to_ptr.vmem [resolvable:$true] %s3049
      %3052 = dma.vmem_to_hbm [thread:$0]  %s3050, 128, %s15, [#allocation19]
    $region101: #{tpu_custom_call.1} parent=1 // pred_fallthru
      _
    // Predicated region
    $region102: #{tpu_custom_call.1} parent=1 // pred_check
      _
    $region103: #{tpu_custom_call.1} parent=1 // pred_check_branch
      %3054 = sbr.rel (0) target = $region105
    $region104: #{tpu_custom_call.1} parent=1 // pred_region
      %s3056 = ssub.s32 128, 128
      %3057 = vsyncadd [#allocation19], %s3056
      %s3059 = sshll.u32 [#allocation20], 4
      %s3060 = int_to_ptr.vmem [resolvable:$true] %s3059
      %3062 = dma.vmem_to_hbm [thread:$0]  %s3060, 128, %s16, [#allocation19]
    $region105: #{tpu_custom_call.1} parent=1 // pred_fallthru
      _
    // Predicated region
    $region106: #{tpu_custom_call.1} parent=1 // pred_check
      _
    $region107: #{tpu_custom_call.1} parent=1 // pred_check_branch
      %3064 = sbr.rel (0) target = $region109
    $region108: #{tpu_custom_call.1} parent=1 // pred_region
      %3065 = dma.done [#allocation4], 128
    $region109: #{tpu_custom_call.1} parent=1 // pred_fallthru
      _
    // Predicated region
    $region110: #{tpu_custom_call.1} parent=1 // pred_check
      _
    $region111: #{tpu_custom_call.1} parent=1 // pred_check_branch
      %3067 = sbr.rel (0) target = $region113
    $region112: #{tpu_custom_call.1} parent=1 // pred_region
      %3068 = dma.done [#allocation19], 128
    $region113: #{tpu_custom_call.1} parent=1 // pred_fallthru
      _
    // Predicated region
    $region114: #{tpu_custom_call.1} parent=1 // pred_check
      _
    $region115: #{tpu_custom_call.1} parent=1 // pred_check_branch
      %3070 = sbr.rel (0) target = $region117
    $region116: #{tpu_custom_call.1} parent=1 // pred_region
      %3071 = dma.done [#allocation19], 128
    $region117: #{tpu_custom_call.1} parent=1 // pred_fallthru
      _
    %3072 = vsyncpa [#allocation3], 1
    %3073 = vsyncpa [#allocation6], 1
    %3074 = vsyncpa [#allocation9], 1
    %3075 = vsyncpa [#allocation12], 1
    %3076 = vsyncpa [#allocation15], 1
    %3077 = vsyncpa [#allocation4], 1
    %3078 = vsyncpa [#allocation19], 1

</llo_original>
